<compile_context>
chip_gen: v6e
topology: v6e:2x2x1
jax: 0.10.0
libtpu: 0.0.40
codegen_flags: <defaults>
</compile_context>

<pallas_src>
import functools
import math

import jax
import jax.numpy as jnp
import numpy as np
from jax import lax
from jax.experimental import pallas as pl
from jax.experimental.pallas import tpu as pltpu

_BIG = 1.0e30  # finite sentinel for masked max/min


def _round_up(x, m):
    return (x + m - 1) // m * m


def _vmem_limit(bytes_needed):
    # Sized from actual buffer math (+2x headroom), clamped well inside v7x's
    # 64 MiB physical VMEM (review item) with a 16 MiB floor.
    return int(min(40 * 1024 * 1024, max(16 * 1024 * 1024, 2 * bytes_needed)))


# --------------------------------------------------------------------------
# Pass 1: node-only work (independent of hyperedges) — done once per node tile.
# --------------------------------------------------------------------------
def _node_kernel(feat_ref, w_enc_ref, b_enc_ref, w_diff_ref, w_rel_ref,
                 a_ref, xrel_ref, *, mxu_dtype):
    x_enc = jnp.dot(feat_ref[...].astype(mxu_dtype),
                    w_enc_ref[...].astype(mxu_dtype),
                    preferred_element_type=jnp.float32) + b_enc_ref[...]
    xe = x_enc.astype(mxu_dtype)
    # A = x_enc @ (W_root - W_rel)   (per-node GraphConv term)
    a_ref[...] = jnp.dot(xe, w_diff_ref[...].astype(mxu_dtype),
                         preferred_element_type=jnp.float32)
    # Xrel = x_enc @ W_rel           (so C[e] = sum_{members} Xrel + b_rel)
    xrel_ref[...] = jnp.dot(xe, w_rel_ref[...].astype(mxu_dtype),
                            preferred_element_type=jnp.float32)


# --------------------------------------------------------------------------
# Pass 2: per-hyperedge accumulation, pooling and prediction head.
# --------------------------------------------------------------------------
def _edge_kernel(bt_ref, b_ref, a_ref, xrel_ref, b_rel_ref, w_lin_ref, b_lin_ref,
                 out_ref, c_acc, amax_acc, amin_acc, *, node_chunk, mxu_dtype):
    n = pl.program_id(1)

    @pl.when(n == 0)
    def _init():
        c_acc[...] = jnp.zeros(c_acc.shape, jnp.float32)
        amax_acc[...] = jnp.full(amax_acc.shape, -_BIG, jnp.float32)
        amin_acc[...] = jnp.full(amin_acc.shape, _BIG, jnp.float32)

    # C accumulation on the MXU, natural [h_tile, n_tile] @ [n_tile, CONV_P].
    c_acc[...] += jnp.dot(bt_ref[...].astype(mxu_dtype),
                          xrel_ref[...].astype(mxu_dtype),
                          preferred_element_type=jnp.float32)

    # Streaming masked max/min of A over member nodes of this node tile.
    # node_chunk rows (sublanes) per step; accumulators carried as values so
    # they stay in vregs across the loop; elementwise math kept in f32.
    n_tile = b_ref.shape[0]

    def _chunk(s, carry):
        amax, amin = carry
        k = pl.multiple_of(s * node_chunk, node_chunk)
        a_c = a_ref[pl.ds(k, node_chunk), :]            # [chunk, CONV_P]
        b_c = b_ref[pl.ds(k, node_chunk), :]            # [chunk, h_tile]
        bias = (b_c - 1.0) * _BIG                       # 0 member, -BIG otherwise
        cand_max = a_c[:, None, :] + bias[:, :, None]   # [chunk, h_tile, CONV_P]
        cand_min = a_c[:, None, :] - bias[:, :, None]
        amax = jnp.maximum(amax, jnp.max(cand_max, axis=0))
        amin = jnp.minimum(amin, jnp.min(cand_min, axis=0))
        return amax, amin

    amax, amin = lax.fori_loop(0, n_tile // node_chunk, _chunk,
                               (amax_acc[...], amin_acc[...]))
    amax_acc[...] = amax
    amin_acc[...] = amin

    @pl.when(n == pl.num_programs(1) - 1)
    def _finalize():
        c = c_acc[...] + b_rel_ref[...]                 # [h_tile, CONV_P]
        z_max = jnp.maximum(c + amax_acc[...], 0.0)
        z_min = jnp.maximum(c + amin_acc[...], 0.0)
        diff = z_max - z_min
        # Mask padded / memberless hyperedges (amax still at -BIG sentinel).
        empty = amax_acc[:, 0:1] < (-0.5 * _BIG)        # [h_tile, 1]
        diff = jnp.where(empty, 0.0, diff)
        # Lane-dense logits row [1, h_tile]: w_lin (1, CONV) contracted with diff.
        logits = lax.dot_general(w_lin_ref[...], diff, (((1,), (1,)), ((), ())),
                                 preferred_element_type=jnp.float32) + b_lin_ref[...]
        out_ref[...] = pl.reciprocal(1.0 + jnp.exp(-logits), approx=True)


# --------------------------------------------------------------------------
# Wrapper
# --------------------------------------------------------------------------
def _nhp_pallas(feat_p, bt_p, b_p, w_enc, b_enc, w_diff, w_rel, b_rel, w_lin_row,
                b_lin, *, n_tile, h_tile, node_chunk, mxu_dtype,
                single_buffer_weights):
    N_P, F_P = feat_p.shape
    H_P = bt_p.shape[0]
    EMB_P = w_enc.shape[1]
    CONV_P = w_rel.shape[1]

    def resident(shape, index_map):
        # Constant-index weights: request single buffering to save VMEM.
        if single_buffer_weights:
            return pl.BlockSpec(shape, index_map, pipeline_mode=pl.Buffered(1))
        return pl.BlockSpec(shape, index_map)

    # ---- pass 1: node-only matmuls (not redone per H tile) ------------------
    enc_bytes = 4 * (2 * n_tile * F_P
                     + 2 * (F_P * EMB_P + EMB_P + 2 * EMB_P * CONV_P)
                     + 2 * 2 * n_tile * CONV_P
                     + 2 * n_tile * EMB_P)
    a_p, xrel_p = pl.pallas_call(
        functools.partial(_node_kernel, mxu_dtype=mxu_dtype),
        out_shape=(jax.ShapeDtypeStruct((N_P, CONV_P), jnp.float32),
                   jax.ShapeDtypeStruct((N_P, CONV_P), jnp.float32)),
        grid_spec=pltpu.PrefetchScalarGridSpec(
            num_scalar_prefetch=0,
            grid=(N_P // n_tile,),
            in_specs=[
                pl.BlockSpec((n_tile, F_P), lambda i: (i, 0)),    # feature tile
                resident((F_P, EMB_P), lambda i: (0, 0)),          # w_enc
                resident((1, EMB_P), lambda i: (0, 0)),            # b_enc
                resident((EMB_P, CONV_P), lambda i: (0, 0)),       # w_root - w_rel
                resident((EMB_P, CONV_P), lambda i: (0, 0)),       # w_rel
            ],
            out_specs=[
                pl.BlockSpec((n_tile, CONV_P), lambda i: (i, 0)),  # A
                pl.BlockSpec((n_tile, CONV_P), lambda i: (i, 0)),  # Xrel
            ]),
        compiler_params=pltpu.CompilerParams(
            dimension_semantics=("parallel",),
            vmem_limit_bytes=_vmem_limit(enc_bytes)),
    )(feat_p, w_enc, b_enc, w_diff, w_rel)

    # ---- pass 2: per-hyperedge reduction + head ------------------------------
    # H axis "parallel" (megacore / v7x 2-TC sharding; with large H this gives
    # >= 2 programs per core), N axis "arbitrary" (reduction, innermost).
    grid = (H_P // h_tile, N_P // n_tile)
    edge_bytes = 4 * (2 * (2 * h_tile * n_tile + 2 * n_tile * CONV_P)
                      + 2 * (2 * CONV_P + 1)
                      + 2 * h_tile
                      + 3 * h_tile * CONV_P
                      + 3 * node_chunk * h_tile * CONV_P)
    out = pl.pallas_call(
        functools.partial(_edge_kernel, node_chunk=node_chunk, mxu_dtype=mxu_dtype),
        out_shape=jax.ShapeDtypeStruct((1, H_P), jnp.float32),
        grid_spec=pltpu.PrefetchScalarGridSpec(
            num_scalar_prefetch=0,
            grid=grid,
            in_specs=[
                pl.BlockSpec((h_tile, n_tile), lambda i, n: (i, n)),   # B^T tile
                pl.BlockSpec((n_tile, h_tile), lambda i, n: (n, i)),   # B tile
                pl.BlockSpec((n_tile, CONV_P), lambda i, n: (n, 0)),   # A tile
                pl.BlockSpec((n_tile, CONV_P), lambda i, n: (n, 0)),   # Xrel tile
                resident((1, CONV_P), lambda i, n: (0, 0)),            # b_rel
                resident((1, CONV_P), lambda i, n: (0, 0)),            # w_lin row
                resident((1, 1), lambda i, n: (0, 0)),                 # b_lin
            ],
            out_specs=pl.BlockSpec((1, h_tile), lambda i, n: (0, i)),
            scratch_shapes=[
                pltpu.VMEM((h_tile, CONV_P), jnp.float32),   # running C
                pltpu.VMEM((h_tile, CONV_P), jnp.float32),   # running A_max
                pltpu.VMEM((h_tile, CONV_P), jnp.float32),   # running A_min
            ]),
        compiler_params=pltpu.CompilerParams(
            dimension_semantics=("parallel", "arbitrary"),
            vmem_limit_bytes=_vmem_limit(edge_bytes)),
    )(bt_p, b_p, a_p, xrel_p, b_rel, w_lin_row, b_lin)
    return out


def nhp_forward(feature, incidence, params, *, n_tile=256, h_tile=128,
                node_chunk=8, mxu_dtype=jnp.float32):
    feature = jnp.asarray(feature, jnp.float32)
    B = jnp.asarray(incidence, jnp.float32)
    N, F = feature.shape
    H = B.shape[1]

    # Lane dims padded to multiples of 128; node / hyperedge tile sizes are
    # lane dims of the incidence tiles, so they are multiples of 128 too.
    F_P = _round_up(F, 128)
    EMB_P = _round_up(params["w_enc"].shape[1], 128)
    CONV_P = _round_up(params["w_rel"].shape[1], 128)
    n_tile = min(_round_up(n_tile, 128), _round_up(N, 128))
    h_tile = min(_round_up(h_tile, 128), _round_up(H, 128))
    N_P = _round_up(N, n_tile)
    H_P = _round_up(H, h_tile)
    node_chunk = max(1, math.gcd(max(1, node_chunk), n_tile))

    def pad2(a, rows, cols):
        a = jnp.asarray(a, jnp.float32)
        return jnp.pad(a, ((0, rows - a.shape[0]), (0, cols - a.shape[1])))

    feat_p = pad2(feature, N_P, F_P)
    bt_p = pad2(jnp.transpose(B), H_P, N_P)       # MXU-natural incidence form
    b_p = pad2(B, N_P, H_P)                       # nodes-on-sublanes form (stream)
    w_enc = pad2(params["w_enc"], F_P, EMB_P)
    b_enc = pad2(params["b_enc"], 1, EMB_P)
    w_diff = pad2(params["w_root"] - params["w_rel"], EMB_P, CONV_P)  # hoisted
    w_rel = pad2(params["w_rel"], EMB_P, CONV_P)
    b_rel = pad2(params["b_rel"], 1, CONV_P)
    w_lin_row = pad2(jnp.transpose(params["w_lin"]), 1, CONV_P)       # [1, CONV_P]
    b_lin = jnp.reshape(jnp.asarray(params["b_lin"], jnp.float32), (1, 1))

    args = (feat_p, bt_p, b_p, w_enc, b_enc, w_diff, w_rel, b_rel, w_lin_row, b_lin)
    kw = dict(n_tile=n_tile, h_tile=h_tile, node_chunk=node_chunk,
              mxu_dtype=mxu_dtype)
    try:
        out = _nhp_pallas(*args, **kw, single_buffer_weights=True)
    except Exception:
        # Fallback if single-buffered resident weights aren't supported here.
        out = _nhp_pallas(*args, **kw, single_buffer_weights=False)
    return jnp.reshape(out[0, :H], (H, 1))


# --------------------------------------------------------------------------
# Pure-numpy mirror of the PyTorch forward (per-hyperedge clique GraphConv).
# --------------------------------------------------------------------------
def nhp_reference(feature, incidence, params):
    feature = np.asarray(feature, np.float32)
    B = np.asarray(incidence, np.float32)
    w_enc = np.asarray(params["w_enc"]); b_enc = np.asarray(params["b_enc"])
    w_root = np.asarray(params["w_root"]); w_rel = np.asarray(params["w_rel"])
    b_rel = np.asarray(params["b_rel"])
    w_lin = np.asarray(params["w_lin"]); b_lin = np.asarray(params["b_lin"])

    x_enc = feature @ w_enc + b_enc
    H = B.shape[1]
    outs = []
    for e in range(H):
        members = np.nonzero(B[:, e] > 0.5)[0]
        xm = x_enc[members]
        s = xm.sum(axis=0, keepdims=True)
        conv = xm @ w_root + (s - xm) @ w_rel + b_rel
        conv = np.maximum(conv, 0.0)
        diff = conv.max(axis=0) - conv.min(axis=0)
        logit = diff @ w_lin[:, 0] + b_lin[0, 0]
        outs.append(1.0 / (1.0 + np.exp(-logit)))
    return np.asarray(outs, np.float32).reshape(H, 1)


if __name__ == "__main__":
    # Small shapes consistent with the module: N nodes, F input features,
    # H hyperedges, emb_dim, conv_dim.
    N, F, H = 16, 12, 8
    EMB, CONV = 32, 32

    key = jax.random.PRNGKey(0)
    kf, kb, k1, k2, k3, k4, k5, k6, k7 = jax.random.split(key, 9)

    feature = jax.random.normal(kf, (N, F), dtype=jnp.float32)

    # Random incidence matrix; guarantee every hyperedge has >= 2 member nodes.
    B_np = np.array(jax.random.uniform(kb, (N, H)) < 0.3, dtype=np.float32)
    for e in range(H):
        B_np[(2 * e) % N, e] = 1.0
        B_np[(2 * e + 1) % N, e] = 1.0
    B = jnp.asarray(B_np, dtype=jnp.float32)

    params = {
        # nn.Linear(F, EMB): stored pre-transposed as [F, EMB]
        "w_enc": 0.1 * jax.random.normal(k1, (F, EMB), dtype=jnp.float32),
        "b_enc": 0.1 * jax.random.normal(k2, (1, EMB), dtype=jnp.float32),
        # gnn.GraphConv(EMB, CONV): lin_root (no bias), lin_rel (with bias)
        "w_root": 0.1 * jax.random.normal(k3, (EMB, CONV), dtype=jnp.float32),
        "w_rel": 0.1 * jax.random.normal(k4, (EMB, CONV), dtype=jnp.float32),
        "b_rel": 0.1 * jax.random.normal(k5, (1, CONV), dtype=jnp.float32),
        # nn.Linear(CONV, 1): stored pre-transposed as [CONV, 1]
        "w_lin": 0.1 * jax.random.normal(k6, (CONV, 1), dtype=jnp.float32),
        "b_lin": 0.1 * jax.random.normal(k7, (1, 1), dtype=jnp.float32),
    }

    ref = nhp_reference(feature, B, params)

    # f32 MXU path (exact-ish match to the f32 reference).
    out_f32 = jax.block_until_ready(nhp_forward(feature, B, params))
    np.testing.assert_allclose(np.asarray(out_f32), ref, rtol=3e-3, atol=3e-3)

    # bf16 MXU-operand fast path (v6e/v7x review item), f32 accumulation.
    out_bf16 = jax.block_until_ready(
        nhp_forward(feature, B, params, mxu_dtype=jnp.bfloat16))
    np.testing.assert_allclose(np.asarray(out_bf16), ref, rtol=3e-2, atol=3e-2)

    print("KERNEL_OK")
</pallas_src>

<mosaic_0001>
module attributes {stable_mosaic.version = 11 : i64} {
  func.func @_node_kernel(%arg0: i32, %arg1: memref<128x128xf32, #tpu.memory_space<vmem>>, %arg2: memref<128x128xf32, #tpu.memory_space<vmem>>, %arg3: memref<1x128xf32, #tpu.memory_space<vmem>>, %arg4: memref<128x128xf32, #tpu.memory_space<vmem>>, %arg5: memref<128x128xf32, #tpu.memory_space<vmem>>, %arg6: memref<128x128xf32, #tpu.memory_space<vmem>>, %arg7: memref<128x128xf32, #tpu.memory_space<vmem>>) attributes {dimension_semantics = [#tpu.dimension_semantics<parallel>], iteration_bounds = array<i64: 1>, scalar_prefetch = 0 : i64, scratch_operands = 0 : i64, tpu.core_type = #tpu.core_type<tc>, window_params = [{transform_indices = @transform_0, window_bounds = array<i64: 128, 128>}, {pipeline_mode = #tpu.pipeline_mode<synchronous>, transform_indices = @transform_1, window_bounds = array<i64: 128, 128>}, {pipeline_mode = #tpu.pipeline_mode<synchronous>, transform_indices = @transform_2, window_bounds = array<i64: 1, 128>}, {pipeline_mode = #tpu.pipeline_mode<synchronous>, transform_indices = @transform_3, window_bounds = array<i64: 128, 128>}, {pipeline_mode = #tpu.pipeline_mode<synchronous>, transform_indices = @transform_4, window_bounds = array<i64: 128, 128>}, {transform_indices = @transform_5, window_bounds = array<i64: 128, 128>}, {transform_indices = @transform_6, window_bounds = array<i64: 128, 128>}]} {
    %c0 = arith.constant 0 : index
    %c0_0 = arith.constant 0 : index
    %0 = vector.load %arg1[%c0, %c0_0] : memref<128x128xf32, #tpu.memory_space<vmem>>, vector<128x128xf32>
    %c0_1 = arith.constant 0 : index
    %c0_2 = arith.constant 0 : index
    %1 = vector.load %arg2[%c0_1, %c0_2] : memref<128x128xf32, #tpu.memory_space<vmem>>, vector<128x128xf32>
    %cst = arith.constant dense<0.000000e+00> : vector<128x128xf32>
    %2 = tpu.matmul %0, %1, %cst {dimension_numbers = #tpu.dot_dimension_numbers<[1], [0], [0], [1], [0, 0, 1, 1], [], []>} : vector<128x128xf32>, vector<128x128xf32>, vector<128x128xf32> -> vector<128x128xf32>
    %c0_3 = arith.constant 0 : index
    %c0_4 = arith.constant 0 : index
    %3 = vector.load %arg3[%c0_3, %c0_4] : memref<1x128xf32, #tpu.memory_space<vmem>>, vector<1x128xf32>
    %4 = vector.broadcast %3 : vector<1x128xf32> to vector<128x128xf32>
    %5 = arith.addf %2, %4 : vector<128x128xf32>
    %c0_5 = arith.constant 0 : index
    %c0_6 = arith.constant 0 : index
    %6 = vector.load %arg4[%c0_5, %c0_6] : memref<128x128xf32, #tpu.memory_space<vmem>>, vector<128x128xf32>
    %cst_7 = arith.constant dense<0.000000e+00> : vector<128x128xf32>
    %7 = tpu.matmul %5, %6, %cst_7 {dimension_numbers = #tpu.dot_dimension_numbers<[1], [0], [0], [1], [0, 0, 1, 1], [], []>} : vector<128x128xf32>, vector<128x128xf32>, vector<128x128xf32> -> vector<128x128xf32>
    %c0_8 = arith.constant 0 : index
    %c0_9 = arith.constant 0 : index
    %8 = vector.load %arg6[%c0_8, %c0_9] : memref<128x128xf32, #tpu.memory_space<vmem>>, vector<128x128xf32>
    tpu.vector_store %arg6[%c0_8, %c0_9], %7 {strides = array<i32>} : memref<128x128xf32, #tpu.memory_space<vmem>>, vector<128x128xf32>,
    %c0_10 = arith.constant 0 : index
    %c0_11 = arith.constant 0 : index
    %9 = vector.load %arg5[%c0_10, %c0_11] : memref<128x128xf32, #tpu.memory_space<vmem>>, vector<128x128xf32>
    %cst_12 = arith.constant dense<0.000000e+00> : vector<128x128xf32>
    %10 = tpu.matmul %5, %9, %cst_12 {dimension_numbers = #tpu.dot_dimension_numbers<[1], [0], [0], [1], [0, 0, 1, 1], [], []>} : vector<128x128xf32>, vector<128x128xf32>, vector<128x128xf32> -> vector<128x128xf32>
    %c0_13 = arith.constant 0 : index
    %c0_14 = arith.constant 0 : index
    %11 = vector.load %arg7[%c0_13, %c0_14] : memref<128x128xf32, #tpu.memory_space<vmem>>, vector<128x128xf32>
    tpu.vector_store %arg7[%c0_13, %c0_14], %10 {strides = array<i32>} : memref<128x128xf32, #tpu.memory_space<vmem>>, vector<128x128xf32>,
    return
  }
  func.func @transform_0(%arg0: i32) -> (i32, i32) {
    %c0_i32 = arith.constant 0 : i32
    %c0_i32_0 = arith.constant 0 : i32
    return %arg0, %c0_i32 : i32, i32
  }
  func.func @transform_1(%arg0: i32) -> (i32, i32) {
    %c0_i32 = arith.constant 0 : i32
    %c0_i32_0 = arith.constant 0 : i32
    %c0_i32_1 = arith.constant 0 : i32
    return %c0_i32, %c0_i32_0 : i32, i32
  }
  func.func @transform_2(%arg0: i32) -> (i32, i32) {
    %c0_i32 = arith.constant 0 : i32
    %c0_i32_0 = arith.constant 0 : i32
    %c0_i32_1 = arith.constant 0 : i32
    return %c0_i32, %c0_i32_0 : i32, i32
  }
  func.func @transform_3(%arg0: i32) -> (i32, i32) {
    %c0_i32 = arith.constant 0 : i32
    %c0_i32_0 = arith.constant 0 : i32
    %c0_i32_1 = arith.constant 0 : i32
    return %c0_i32, %c0_i32_0 : i32, i32
  }
  func.func @transform_4(%arg0: i32) -> (i32, i32) {
    %c0_i32 = arith.constant 0 : i32
    %c0_i32_0 = arith.constant 0 : i32
    %c0_i32_1 = arith.constant 0 : i32
    return %c0_i32, %c0_i32_0 : i32, i32
  }
  func.func @transform_5(%arg0: i32) -> (i32, i32) {
    %c0_i32 = arith.constant 0 : i32
    %c0_i32_0 = arith.constant 0 : i32
    return %arg0, %c0_i32 : i32, i32
  }
  func.func @transform_6(%arg0: i32) -> (i32, i32) {
    %c0_i32 = arith.constant 0 : i32
    %c0_i32_0 = arith.constant 0 : i32
    return %arg0, %c0_i32 : i32, i32
  }
}

module attributes {stable_mosaic.version = 11 : i64} {
  func.func @_node_kernel(%arg0: i32, %arg1: memref<128x128xf32, #tpu.memory_space<vmem>>, %arg2: memref<128x128xf32, #tpu.memory_space<vmem>>, %arg3: memref<1x128xf32, #tpu.memory_space<vmem>>, %arg4: memref<128x128xf32, #tpu.memory_space<vmem>>, %arg5: memref<128x128xf32, #tpu.memory_space<vmem>>, %arg6: memref<128x128xf32, #tpu.memory_space<vmem>>, %arg7: memref<128x128xf32, #tpu.memory_space<vmem>>) attributes {dimension_semantics = [#tpu.dimension_semantics<parallel>], iteration_bounds = array<i64: 1>, scalar_prefetch = 0 : i64, scratch_operands = 0 : i64, tpu.core_type = #tpu.core_type<tc>, window_params = [{transform_indices = @transform_0, window_bounds = array<i64: 128, 128>}, {pipeline_mode = #tpu.pipeline_mode<synchronous>, transform_indices = @transform_1, window_bounds = array<i64: 128, 128>}, {pipeline_mode = #tpu.pipeline_mode<synchronous>, transform_indices = @transform_2, window_bounds = array<i64: 1, 128>}, {pipeline_mode = #tpu.pipeline_mode<synchronous>, transform_indices = @transform_3, window_bounds = array<i64: 128, 128>}, {pipeline_mode = #tpu.pipeline_mode<synchronous>, transform_indices = @transform_4, window_bounds = array<i64: 128, 128>}, {transform_indices = @transform_5, window_bounds = array<i64: 128, 128>}, {transform_indices = @transform_6, window_bounds = array<i64: 128, 128>}]} {
    %c0 = arith.constant 0 : index
    %c0_0 = arith.constant 0 : index
    %0 = vector.load %arg1[%c0, %c0_0] : memref<128x128xf32, #tpu.memory_space<vmem>>, vector<128x128xf32>
    %c0_1 = arith.constant 0 : index
    %c0_2 = arith.constant 0 : index
    %1 = vector.load %arg2[%c0_1, %c0_2] : memref<128x128xf32, #tpu.memory_space<vmem>>, vector<128x128xf32>
    %cst = arith.constant dense<0.000000e+00> : vector<128x128xf32>
    %2 = tpu.matmul %0, %1, %cst {dimension_numbers = #tpu.dot_dimension_numbers<[1], [0], [0], [1], [0, 0, 1, 1], [], []>} : vector<128x128xf32>, vector<128x128xf32>, vector<128x128xf32> -> vector<128x128xf32>
    %c0_3 = arith.constant 0 : index
    %c0_4 = arith.constant 0 : index
    %3 = vector.load %arg3[%c0_3, %c0_4] : memref<1x128xf32, #tpu.memory_space<vmem>>, vector<1x128xf32>
    %4 = vector.broadcast %3 : vector<1x128xf32> to vector<128x128xf32>
    %5 = arith.addf %2, %4 : vector<128x128xf32>
    %c0_5 = arith.constant 0 : index
    %c0_6 = arith.constant 0 : index
    %6 = vector.load %arg4[%c0_5, %c0_6] : memref<128x128xf32, #tpu.memory_space<vmem>>, vector<128x128xf32>
    %cst_7 = arith.constant dense<0.000000e+00> : vector<128x128xf32>
    %7 = tpu.matmul %5, %6, %cst_7 {dimension_numbers = #tpu.dot_dimension_numbers<[1], [0], [0], [1], [0, 0, 1, 1], [], []>} : vector<128x128xf32>, vector<128x128xf32>, vector<128x128xf32> -> vector<128x128xf32>
    %c0_8 = arith.constant 0 : index
    %c0_9 = arith.constant 0 : index
    %8 = vector.load %arg6[%c0_8, %c0_9] : memref<128x128xf32, #tpu.memory_space<vmem>>, vector<128x128xf32>
    tpu.vector_store %arg6[%c0_8, %c0_9], %7 {strides = array<i32>} : memref<128x128xf32, #tpu.memory_space<vmem>>, vector<128x128xf32>,
    %c0_10 = arith.constant 0 : index
    %c0_11 = arith.constant 0 : index
    %9 = vector.load %arg5[%c0_10, %c0_11] : memref<128x128xf32, #tpu.memory_space<vmem>>, vector<128x128xf32>
    %cst_12 = arith.constant dense<0.000000e+00> : vector<128x128xf32>
    %10 = tpu.matmul %5, %9, %cst_12 {dimension_numbers = #tpu.dot_dimension_numbers<[1], [0], [0], [1], [0, 0, 1, 1], [], []>} : vector<128x128xf32>, vector<128x128xf32>, vector<128x128xf32> -> vector<128x128xf32>
    %c0_13 = arith.constant 0 : index
    %c0_14 = arith.constant 0 : index
    %11 = vector.load %arg7[%c0_13, %c0_14] : memref<128x128xf32, #tpu.memory_space<vmem>>, vector<128x128xf32>
    tpu.vector_store %arg7[%c0_13, %c0_14], %10 {strides = array<i32>} : memref<128x128xf32, #tpu.memory_space<vmem>>, vector<128x128xf32>,
    return
  }
  func.func @transform_0(%arg0: i32) -> (i32, i32) {
    %c0_i32 = arith.constant 0 : i32
    %c0_i32_0 = arith.constant 0 : i32
    return %arg0, %c0_i32 : i32, i32
  }
  func.func @transform_1(%arg0: i32) -> (i32, i32) {
    %c0_i32 = arith.constant 0 : i32
    %c0_i32_0 = arith.constant 0 : i32
    %c0_i32_1 = arith.constant 0 : i32
    return %c0_i32, %c0_i32_0 : i32, i32
  }
  func.func @transform_2(%arg0: i32) -> (i32, i32) {
    %c0_i32 = arith.constant 0 : i32
    %c0_i32_0 = arith.constant 0 : i32
    %c0_i32_1 = arith.constant 0 : i32
    return %c0_i32, %c0_i32_0 : i32, i32
  }
  func.func @transform_3(%arg0: i32) -> (i32, i32) {
    %c0_i32 = arith.constant 0 : i32
    %c0_i32_0 = arith.constant 0 : i32
    %c0_i32_1 = arith.constant 0 : i32
    return %c0_i32, %c0_i32_0 : i32, i32
  }
  func.func @transform_4(%arg0: i32) -> (i32, i32) {
    %c0_i32 = arith.constant 0 : i32
    %c0_i32_0 = arith.constant 0 : i32
    %c0_i32_1 = arith.constant 0 : i32
    return %c0_i32, %c0_i32_0 : i32, i32
  }
  func.func @transform_5(%arg0: i32) -> (i32, i32) {
    %c0_i32 = arith.constant 0 : i32
    %c0_i32_0 = arith.constant 0 : i32
    return %arg0, %c0_i32 : i32, i32
  }
  func.func @transform_6(%arg0: i32) -> (i32, i32) {
    %c0_i32 = arith.constant 0 : i32
    %c0_i32_0 = arith.constant 0 : i32
    return %arg0, %c0_i32 : i32, i32
  }
}

</mosaic_0001>

<llo_original>
// kernel: tpu_custom_call.1
$region0: #{tpu_custom_call.1}
  #allocation0 [shape = 'u32[]', space=smem, size = 0x4, offset = 0x4, fixed_abs, tag = 'smem constant byte address 0x4 - core index']
  #allocation1 [shape = 'u32[144,128]{1,0:T(1,128)}', space=vmem, size = 0x12000, scoped, tag = 'internal scratch']
  %s0 = inlined_call_operand.hbm [shape: f32[128,128], index: 0, kind: input, shape index: {}]
  %s1 = inlined_call_operand.hbm [shape: f32[128,128], index: 1, kind: input, shape index: {}]
  %s2 = inlined_call_operand.vmem [shape: f32[1,128], index: 2, kind: input, shape index: {}]
  %s3 = inlined_call_operand.hbm [shape: f32[128,128], index: 3, kind: input, shape index: {}]
  %s4 = inlined_call_operand.hbm [shape: f32[128,128], index: 4, kind: input, shape index: {}]
  %s5 = inlined_call_operand.hbm [shape: f32[128,128], index: 5, kind: output, shape index: {0}]
  %s6 = inlined_call_operand.hbm [shape: f32[128,128], index: 6, kind: output, shape index: {1}]
  %7 = xla_tuple %s5, %s6
  %s8 = sld [smem:[#allocation0]]
  $region54: #{tpu_custom_call.1} parent=0
    _
  %s10 = ssub.s32 1, %s8
  %s11 = scalar_select 0, %s10, %s8
  $region1: #{tpu_custom_call.1} parent=0
    #allocation2 [shape = 'u8[65536]{0}', space=vmem, size = 0x10000, scoped, tag = 'input window, operand 0, single buffered']
    #allocation3 [shape = 's32[1]{0}', space=sflag, size = 0x4, scoped, tag = 'scoped memory for tpu_custom_call.1']
    #allocation4 [shape = 's32[1]{0}', space=sflag, size = 0x4, scoped, tag = 'scoped memory for tpu_custom_call.1']
    #allocation5 [shape = 'u8[65536]{0}', space=vmem, size = 0x10000, scoped, tag = 'input window, operand 1, single buffered']
    #allocation6 [shape = 's32[1]{0}', space=sflag, size = 0x4, scoped, tag = 'scoped memory for tpu_custom_call.1']
    #allocation7 [shape = 'u8[65536]{0}', space=vmem, size = 0x10000, scoped, tag = 'input window, operand 3, single buffered']
    #allocation8 [shape = 'u8[65536]{0}', space=vmem, size = 0x10000, scoped, tag = 'input window, operand 4, single buffered']
    #allocation9 [shape = 's32[1]{0}', space=sflag, size = 0x4, scoped, tag = 'scoped memory for tpu_custom_call.1']
    #allocation10 [shape = 'u8[65536]{0}', space=vmem, size = 0x10000, scoped, tag = 'output window, operand 0, single buffered']
    #allocation11 [shape = 'u8[65536]{0}', space=vmem, size = 0x10000, scoped, tag = 'output window, operand 1, single buffered']
    #allocation12 [shape = 's32[1]{0}', space=sflag, size = 0x4, scoped, tag = 'scoped memory for tpu_custom_call.1']
    %12 = vsyncpa [#allocation3], 0
    %13 = vsyncpa [#allocation6], 0
    %14 = vsyncpa [#allocation9], 0
    %15 = vsyncpa [#allocation4], 0
    %16 = vsyncpa [#allocation12], 0
    // Predicated region
    $region2: #{tpu_custom_call.1} parent=1 // pred_check
      _
    $region3: #{tpu_custom_call.1} parent=1 // pred_check_branch
      %18 = sbr.rel (0) target = $region5
    $region4: #{tpu_custom_call.1} parent=1 // pred_region
      %s20 = ssub.s32 2048, 2048
      %21 = vsyncadd [#allocation3], %s20
      %s22 = sshll.u32 [#allocation2], 4
      %s23 = int_to_ptr.vmem [resolvable:$true] %s22
      %28 = dma.hbm_to_vmem [thread:$0]  %s0, 2048, %s23, [#allocation3], 128, 128, 8
    $region5: #{tpu_custom_call.1} parent=1 // pred_fallthru
      _
    // Predicated region
    $region6: #{tpu_custom_call.1} parent=1 // pred_check
      _
    $region7: #{tpu_custom_call.1} parent=1 // pred_check_branch
      %30 = sbr.rel (0) target = $region9
    $region8: #{tpu_custom_call.1} parent=1 // pred_region
      %s32 = ssub.s32 2048, 2048
      %33 = vsyncadd [#allocation6], %s32
      %s34 = sshll.u32 [#allocation5], 4
      %s35 = int_to_ptr.vmem [resolvable:$true] %s34
      %40 = dma.hbm_to_vmem [thread:$0]  %s1, 2048, %s35, [#allocation6], 128, 128, 8
    $region9: #{tpu_custom_call.1} parent=1 // pred_fallthru
      _
    // Predicated region
    $region10: #{tpu_custom_call.1} parent=1 // pred_check
      _
    $region11: #{tpu_custom_call.1} parent=1 // pred_check_branch
      %42 = sbr.rel (0) target = $region13
    $region12: #{tpu_custom_call.1} parent=1 // pred_region
      _
    $region13: #{tpu_custom_call.1} parent=1 // pred_fallthru
      _
    // Predicated region
    $region14: #{tpu_custom_call.1} parent=1 // pred_check
      _
    $region15: #{tpu_custom_call.1} parent=1 // pred_check_branch
      %44 = sbr.rel (0) target = $region17
    $region16: #{tpu_custom_call.1} parent=1 // pred_region
      %s46 = ssub.s32 2048, 2048
      %47 = vsyncadd [#allocation6], %s46
      %s48 = sshll.u32 [#allocation7], 4
      %s49 = int_to_ptr.vmem [resolvable:$true] %s48
      %54 = dma.hbm_to_vmem [thread:$0]  %s3, 2048, %s49, [#allocation6], 128, 128, 8
    $region17: #{tpu_custom_call.1} parent=1 // pred_fallthru
      _
    // Predicated region
    $region18: #{tpu_custom_call.1} parent=1 // pred_check
      _
    $region19: #{tpu_custom_call.1} parent=1 // pred_check_branch
      %56 = sbr.rel (0) target = $region21
    $region20: #{tpu_custom_call.1} parent=1 // pred_region
      %s58 = ssub.s32 2048, 2048
      %59 = vsyncadd [#allocation9], %s58
      %s60 = sshll.u32 [#allocation8], 4
      %s61 = int_to_ptr.vmem [resolvable:$true] %s60
      %66 = dma.hbm_to_vmem [thread:$0]  %s4, 2048, %s61, [#allocation9], 128, 128, 8
    $region21: #{tpu_custom_call.1} parent=1 // pred_fallthru
      _
    // Predicated region
    $region22: #{tpu_custom_call.1} parent=1 // pred_check
      _
    $region23: #{tpu_custom_call.1} parent=1 // pred_check_branch
      %68 = sbr.rel (0) target = $region25
    $region24: #{tpu_custom_call.1} parent=1 // pred_region
      %69 = dma.done [#allocation3], 2048
    $region25: #{tpu_custom_call.1} parent=1 // pred_fallthru
      _
    // Predicated region
    $region26: #{tpu_custom_call.1} parent=1 // pred_check
      _
    $region27: #{tpu_custom_call.1} parent=1 // pred_check_branch
      %71 = sbr.rel (0) target = $region29
    $region28: #{tpu_custom_call.1} parent=1 // pred_region
      %72 = dma.done [#allocation6], 2048
    $region29: #{tpu_custom_call.1} parent=1 // pred_fallthru
      _
    // Predicated region
    $region30: #{tpu_custom_call.1} parent=1 // pred_check
      _
    $region31: #{tpu_custom_call.1} parent=1 // pred_check_branch
      %74 = sbr.rel (0) target = $region33
    $region32: #{tpu_custom_call.1} parent=1 // pred_region
      %75 = dma.done [#allocation6], 2048
    $region33: #{tpu_custom_call.1} parent=1 // pred_fallthru
      _
    // Predicated region
    $region34: #{tpu_custom_call.1} parent=1 // pred_check
      _
    $region35: #{tpu_custom_call.1} parent=1 // pred_check_branch
      %77 = sbr.rel (0) target = $region37
    $region36: #{tpu_custom_call.1} parent=1 // pred_region
      %78 = dma.done [#allocation9], 2048
    $region37: #{tpu_custom_call.1} parent=1 // pred_fallthru
      _
    %v79 = vld [vmem:[#allocation2] sm:$0xff]
    %v80 = vld [vmem:[#allocation2 + $0x8] sm:$0xff]
    %v81 = vld [vmem:[#allocation2 + $0x10] sm:$0xff]
    %v82 = vld [vmem:[#allocation2 + $0x18] sm:$0xff]
    %v83 = vld [vmem:[#allocation2 + $0x20] sm:$0xff]
    %v84 = vld [vmem:[#allocation2 + $0x28] sm:$0xff]
    %v85 = vld [vmem:[#allocation2 + $0x30] sm:$0xff]
    %v86 = vld [vmem:[#allocation2 + $0x38] sm:$0xff]
    %v87 = vld [vmem:[#allocation2 + $0x40] sm:$0xff]
    %v88 = vld [vmem:[#allocation2 + $0x48] sm:$0xff]
    %v89 = vld [vmem:[#allocation2 + $0x50] sm:$0xff]
    %v90 = vld [vmem:[#allocation2 + $0x58] sm:$0xff]
    %v91 = vld [vmem:[#allocation2 + $0x60] sm:$0xff]
    %v92 = vld [vmem:[#allocation2 + $0x68] sm:$0xff]
    %v93 = vld [vmem:[#allocation2 + $0x70] sm:$0xff]
    %v94 = vld [vmem:[#allocation2 + $0x78] sm:$0xff]
    %v95 = vld [vmem:[#allocation5] sm:$0xff]
    %v96 = vld [vmem:[#allocation5 + $0x8] sm:$0xff]
    %v97 = vld [vmem:[#allocation5 + $0x10] sm:$0xff]
    %v98 = vld [vmem:[#allocation5 + $0x18] sm:$0xff]
    %v99 = vld [vmem:[#allocation5 + $0x20] sm:$0xff]
    %v100 = vld [vmem:[#allocation5 + $0x28] sm:$0xff]
    %v101 = vld [vmem:[#allocation5 + $0x30] sm:$0xff]
    %v102 = vld [vmem:[#allocation5 + $0x38] sm:$0xff]
    %v103 = vld [vmem:[#allocation5 + $0x40] sm:$0xff]
    %v104 = vld [vmem:[#allocation5 + $0x48] sm:$0xff]
    %v105 = vld [vmem:[#allocation5 + $0x50] sm:$0xff]
    %v106 = vld [vmem:[#allocation5 + $0x58] sm:$0xff]
    %v107 = vld [vmem:[#allocation5 + $0x60] sm:$0xff]
    %v108 = vld [vmem:[#allocation5 + $0x68] sm:$0xff]
    %v109 = vld [vmem:[#allocation5 + $0x70] sm:$0xff]
    %v110 = vld [vmem:[#allocation5 + $0x78] sm:$0xff]
    %v111 = vld [vmem:[%s2] sm:$0x1]
    %v113 = vlaneseq
    %v114 = vshrl.u32 %v113, 7
    %v115 = vsub.s32 0, %v114
    %v116 = vrot.slane %v111, %v115
    %118 = vmatprep.subr.mxu0 0.0
    %119 = vmatpush1.msra.mxu0 %v110
    %120 = vmatprep.subr.mxu0 0.0
    %121 = vmatpush1.msra.mxu0 %v109
    %122 = vmatprep.subr.mxu0 0.0
    %123 = vmatpush1.msra.mxu0 %v108
    %124 = vmatprep.subr.mxu0 0.0
    %125 = vmatpush1.msra.mxu0 %v107
    %126 = vmatprep.subr.mxu0 0.0
    %127 = vmatpush1.msra.mxu0 %v106
    %128 = vmatprep.subr.mxu0 0.0
    %129 = vmatpush1.msra.mxu0 %v105
    %130 = vmatprep.subr.mxu0 0.0
    %131 = vmatpush1.msra.mxu0 %v104
    %132 = vmatprep.subr.mxu0 0.0
    %133 = vmatpush1.msra.mxu0 %v103
    %134 = vmatprep.subr.mxu0 0.0
    %135 = vmatpush1.msra.mxu0 %v102
    %136 = vmatprep.subr.mxu0 0.0
    %137 = vmatpush1.msra.mxu0 %v101
    %138 = vmatprep.subr.mxu0 0.0
    %139 = vmatpush1.msra.mxu0 %v100
    %140 = vmatprep.subr.mxu0 0.0
    %141 = vmatpush1.msra.mxu0 %v99
    %142 = vmatprep.subr.mxu0 0.0
    %143 = vmatpush1.msra.mxu0 %v98
    %144 = vmatprep.subr.mxu0 0.0
    %145 = vmatpush1.msra.mxu0 %v97
    %146 = vmatprep.subr.mxu0 0.0
    %147 = vmatpush1.msra.mxu0 %v96
    %148 = vmatprep.subr.mxu0 0.0
    %149 = vmatpush1.msra.mxu0 %v95
    %150 = vmatprep.subr.mxu0 0.0
    %151 = vmatpush2.msra.mxu0 0.0
    %152 = vmatprep.subr.mxu0 0.0
    %153 = vmatpush2.msra.mxu0 0.0
    %154 = vmatprep.subr.mxu0 0.0
    %155 = vmatpush2.msra.mxu0 0.0
    %156 = vmatprep.subr.mxu0 0.0
    %157 = vmatpush2.msra.mxu0 0.0
    %158 = vmatprep.subr.mxu0 0.0
    %159 = vmatpush2.msra.mxu0 0.0
    %160 = vmatprep.subr.mxu0 0.0
    %161 = vmatpush2.msra.mxu0 0.0
    %162 = vmatprep.subr.mxu0 0.0
    %163 = vmatpush2.msra.mxu0 0.0
    %164 = vmatprep.subr.mxu0 0.0
    %165 = vmatpush2.msra.mxu0 0.0
    %166 = vmatprep.subr.mxu0 0.0
    %167 = vmatpush2.msra.mxu0 0.0
    %168 = vmatprep.subr.mxu0 0.0
    %169 = vmatpush2.msra.mxu0 0.0
    %170 = vmatprep.subr.mxu0 0.0
    %171 = vmatpush2.msra.mxu0 0.0
    %172 = vmatprep.subr.mxu0 0.0
    %173 = vmatpush2.msra.mxu0 0.0
    %174 = vmatprep.subr.mxu0 0.0
    %175 = vmatpush2.msra.mxu0 0.0
    %176 = vmatprep.subr.mxu0 0.0
    %177 = vmatpush2.msra.mxu0 0.0
    %178 = vmatprep.subr.mxu0 0.0
    %179 = vmatpush2.msra.mxu0 0.0
    %180 = vmatprep.subr.mxu0 0.0
    %181 = vmatpush2.msra.mxu0 0.0
    %182 = vmatprep.mubr.f32.mxu0 0.0
    %183 = vmatmul.mubr.f32.gmra.mxu0 %v79
    %v184 = vpop.f32.mrf.mxu0
    %v185 = vadd.f32 %v116, %v184
    %v186 = vpop.f32.mrf.mxu0
    %187 = vmatprep.mubr.f32.mxu0 0.0
    %188 = vmatmul.mubr.f32.gmra.mxu0 %v80
    %v189 = vpop.f32.mrf.mxu0
    %v190 = vadd.f32 %v116, %v189
    %v191 = vpop.f32.mrf.mxu0
    %192 = vmatprep.mubr.f32.mxu0 0.0
    %193 = vmatmul.mubr.f32.gmra.mxu0 %v81
    %v194 = vpop.f32.mrf.mxu0
    %v195 = vadd.f32 %v116, %v194
    %v196 = vpop.f32.mrf.mxu0
    %197 = vmatprep.mubr.f32.mxu0 0.0
    %198 = vmatmul.mubr.f32.gmra.mxu0 %v82
    %v199 = vpop.f32.mrf.mxu0
    %v200 = vadd.f32 %v116, %v199
    %v201 = vpop.f32.mrf.mxu0
    %202 = vmatprep.mubr.f32.mxu0 0.0
    %203 = vmatmul.mubr.f32.gmra.mxu0 %v83
    %v204 = vpop.f32.mrf.mxu0
    %v205 = vadd.f32 %v116, %v204
    %v206 = vpop.f32.mrf.mxu0
    %207 = vmatprep.mubr.f32.mxu0 0.0
    %208 = vmatmul.mubr.f32.gmra.mxu0 %v84
    %v209 = vpop.f32.mrf.mxu0
    %v210 = vadd.f32 %v116, %v209
    %v211 = vpop.f32.mrf.mxu0
    %212 = vmatprep.mubr.f32.mxu0 0.0
    %213 = vmatmul.mubr.f32.gmra.mxu0 %v85
    %v214 = vpop.f32.mrf.mxu0
    %v215 = vadd.f32 %v116, %v214
    %v216 = vpop.f32.mrf.mxu0
    %217 = vmatprep.mubr.f32.mxu0 0.0
    %218 = vmatmul.mubr.f32.gmra.mxu0 %v86
    %v219 = vpop.f32.mrf.mxu0
    %v220 = vadd.f32 %v116, %v219
    %v221 = vpop.f32.mrf.mxu0
    %222 = vmatprep.mubr.f32.mxu0 0.0
    %223 = vmatmul.mubr.f32.gmra.mxu0 %v87
    %v224 = vpop.f32.mrf.mxu0
    %v225 = vadd.f32 %v116, %v224
    %v226 = vpop.f32.mrf.mxu0
    %227 = vmatprep.mubr.f32.mxu0 0.0
    %228 = vmatmul.mubr.f32.gmra.mxu0 %v88
    %v229 = vpop.f32.mrf.mxu0
    %v230 = vadd.f32 %v116, %v229
    %v231 = vpop.f32.mrf.mxu0
    %232 = vmatprep.mubr.f32.mxu0 0.0
    %233 = vmatmul.mubr.f32.gmra.mxu0 %v89
    %v234 = vpop.f32.mrf.mxu0
    %v235 = vadd.f32 %v116, %v234
    %v236 = vpop.f32.mrf.mxu0
    %237 = vmatprep.mubr.f32.mxu0 0.0
    %238 = vmatmul.mubr.f32.gmra.mxu0 %v90
    %v239 = vpop.f32.mrf.mxu0
    %v240 = vadd.f32 %v116, %v239
    %v241 = vpop.f32.mrf.mxu0
    %242 = vmatprep.mubr.f32.mxu0 0.0
    %243 = vmatmul.mubr.f32.gmra.mxu0 %v91
    %v244 = vpop.f32.mrf.mxu0
    %v245 = vadd.f32 %v116, %v244
    %v246 = vpop.f32.mrf.mxu0
    %247 = vmatprep.mubr.f32.mxu0 0.0
    %248 = vmatmul.mubr.f32.gmra.mxu0 %v92
    %v249 = vpop.f32.mrf.mxu0
    %v250 = vadd.f32 %v116, %v249
    %v251 = vpop.f32.mrf.mxu0
    %252 = vmatprep.mubr.f32.mxu0 0.0
    %253 = vmatmul.mubr.f32.gmra.mxu0 %v93
    %v254 = vpop.f32.mrf.mxu0
    %v255 = vadd.f32 %v116, %v254
    %v256 = vpop.f32.mrf.mxu0
    %257 = vmatprep.mubr.f32.mxu0 0.0
    %258 = vmatmul.mubr.f32.gmra.mxu0 %v94
    %v259 = vpop.f32.mrf.mxu0
    %v260 = vadd.f32 %v116, %v259
    %v261 = vpop.f32.mrf.mxu0
    %262 = vdwg.mxu0
    %v263 = vld [vmem:[#allocation7] sm:$0xff]
    %v264 = vld [vmem:[#allocation7 + $0x8] sm:$0xff]
    %v265 = vld [vmem:[#allocation7 + $0x10] sm:$0xff]
    %v266 = vld [vmem:[#allocation7 + $0x18] sm:$0xff]
    %v267 = vld [vmem:[#allocation7 + $0x20] sm:$0xff]
    %v268 = vld [vmem:[#allocation7 + $0x28] sm:$0xff]
    %v269 = vld [vmem:[#allocation7 + $0x30] sm:$0xff]
    %v270 = vld [vmem:[#allocation7 + $0x38] sm:$0xff]
    %v271 = vld [vmem:[#allocation7 + $0x40] sm:$0xff]
    %v272 = vld [vmem:[#allocation7 + $0x48] sm:$0xff]
    %v273 = vld [vmem:[#allocation7 + $0x50] sm:$0xff]
    %v274 = vld [vmem:[#allocation7 + $0x58] sm:$0xff]
    %v275 = vld [vmem:[#allocation7 + $0x60] sm:$0xff]
    %v276 = vld [vmem:[#allocation7 + $0x68] sm:$0xff]
    %v277 = vld [vmem:[#allocation7 + $0x70] sm:$0xff]
    %v278 = vld [vmem:[#allocation7 + $0x78] sm:$0xff]
    %279 = vmatprep.subr.mxu0 0.0
    %280 = vmatpush1.msra.mxu0 %v278
    %281 = vmatprep.subr.mxu0 0.0
    %282 = vmatpush1.msra.mxu0 %v277
    %283 = vmatprep.subr.mxu0 0.0
    %284 = vmatpush1.msra.mxu0 %v276
    %285 = vmatprep.subr.mxu0 0.0
    %286 = vmatpush1.msra.mxu0 %v275
    %287 = vmatprep.subr.mxu0 0.0
    %288 = vmatpush1.msra.mxu0 %v274
    %289 = vmatprep.subr.mxu0 0.0
    %290 = vmatpush1.msra.mxu0 %v273
    %291 = vmatprep.subr.mxu0 0.0
    %292 = vmatpush1.msra.mxu0 %v272
    %293 = vmatprep.subr.mxu0 0.0
    %294 = vmatpush1.msra.mxu0 %v271
    %295 = vmatprep.subr.mxu0 0.0
    %296 = vmatpush1.msra.mxu0 %v270
    %297 = vmatprep.subr.mxu0 0.0
    %298 = vmatpush1.msra.mxu0 %v269
    %299 = vmatprep.subr.mxu0 0.0
    %300 = vmatpush1.msra.mxu0 %v268
    %301 = vmatprep.subr.mxu0 0.0
    %302 = vmatpush1.msra.mxu0 %v267
    %303 = vmatprep.subr.mxu0 0.0
    %304 = vmatpush1.msra.mxu0 %v266
    %305 = vmatprep.subr.mxu0 0.0
    %306 = vmatpush1.msra.mxu0 %v265
    %307 = vmatprep.subr.mxu0 0.0
    %308 = vmatpush1.msra.mxu0 %v264
    %309 = vmatprep.subr.mxu0 0.0
    %310 = vmatpush1.msra.mxu0 %v263
    %311 = vmatprep.subr.mxu0 0.0
    %312 = vmatpush2.msra.mxu0 0.0
    %313 = vmatprep.subr.mxu0 0.0
    %314 = vmatpush2.msra.mxu0 0.0
    %315 = vmatprep.subr.mxu0 0.0
    %316 = vmatpush2.msra.mxu0 0.0
    %317 = vmatprep.subr.mxu0 0.0
    %318 = vmatpush2.msra.mxu0 0.0
    %319 = vmatprep.subr.mxu0 0.0
    %320 = vmatpush2.msra.mxu0 0.0
    %321 = vmatprep.subr.mxu0 0.0
    %322 = vmatpush2.msra.mxu0 0.0
    %323 = vmatprep.subr.mxu0 0.0
    %324 = vmatpush2.msra.mxu0 0.0
    %325 = vmatprep.subr.mxu0 0.0
    %326 = vmatpush2.msra.mxu0 0.0
    %327 = vmatprep.subr.mxu0 0.0
    %328 = vmatpush2.msra.mxu0 0.0
    %329 = vmatprep.subr.mxu0 0.0
    %330 = vmatpush2.msra.mxu0 0.0
    %331 = vmatprep.subr.mxu0 0.0
    %332 = vmatpush2.msra.mxu0 0.0
    %333 = vmatprep.subr.mxu0 0.0
    %334 = vmatpush2.msra.mxu0 0.0
    %335 = vmatprep.subr.mxu0 0.0
    %336 = vmatpush2.msra.mxu0 0.0
    %337 = vmatprep.subr.mxu0 0.0
    %338 = vmatpush2.msra.mxu0 0.0
    %339 = vmatprep.subr.mxu0 0.0
    %340 = vmatpush2.msra.mxu0 0.0
    %341 = vmatprep.subr.mxu0 0.0
    %342 = vmatpush2.msra.mxu0 0.0
    %343 = vmatprep.mubr.f32.mxu0 0.0
    %344 = vmatmul.mubr.f32.gmra.mxu0 %v185
    %v345 = vpop.f32.mrf.mxu0
    %v346 = vadd.f32 0.0, %v345
    %v347 = vpop.f32.mrf.mxu0
    %348 = vmatprep.mubr.f32.mxu0 0.0
    %349 = vmatmul.mubr.f32.gmra.mxu0 %v190
    %v350 = vpop.f32.mrf.mxu0
    %v351 = vadd.f32 0.0, %v350
    %v352 = vpop.f32.mrf.mxu0
    %353 = vmatprep.mubr.f32.mxu0 0.0
    %354 = vmatmul.mubr.f32.gmra.mxu0 %v195
    %v355 = vpop.f32.mrf.mxu0
    %v356 = vadd.f32 0.0, %v355
    %v357 = vpop.f32.mrf.mxu0
    %358 = vmatprep.mubr.f32.mxu0 0.0
    %359 = vmatmul.mubr.f32.gmra.mxu0 %v200
    %v360 = vpop.f32.mrf.mxu0
    %v361 = vadd.f32 0.0, %v360
    %v362 = vpop.f32.mrf.mxu0
    %363 = vmatprep.mubr.f32.mxu0 0.0
    %364 = vmatmul.mubr.f32.gmra.mxu0 %v205
    %v365 = vpop.f32.mrf.mxu0
    %v366 = vadd.f32 0.0, %v365
    %v367 = vpop.f32.mrf.mxu0
    %368 = vmatprep.mubr.f32.mxu0 0.0
    %369 = vmatmul.mubr.f32.gmra.mxu0 %v210
    %v370 = vpop.f32.mrf.mxu0
    %v371 = vadd.f32 0.0, %v370
    %v372 = vpop.f32.mrf.mxu0
    %373 = vmatprep.mubr.f32.mxu0 0.0
    %374 = vmatmul.mubr.f32.gmra.mxu0 %v215
    %v375 = vpop.f32.mrf.mxu0
    %v376 = vadd.f32 0.0, %v375
    %v377 = vpop.f32.mrf.mxu0
    %378 = vmatprep.mubr.f32.mxu0 0.0
    %379 = vmatmul.mubr.f32.gmra.mxu0 %v220
    %v380 = vpop.f32.mrf.mxu0
    %v381 = vadd.f32 0.0, %v380
    %v382 = vpop.f32.mrf.mxu0
    %383 = vmatprep.mubr.f32.mxu0 0.0
    %384 = vmatmul.mubr.f32.gmra.mxu0 %v225
    %v385 = vpop.f32.mrf.mxu0
    %v386 = vadd.f32 0.0, %v385
    %v387 = vpop.f32.mrf.mxu0
    %388 = vmatprep.mubr.f32.mxu0 0.0
    %389 = vmatmul.mubr.f32.gmra.mxu0 %v230
    %v390 = vpop.f32.mrf.mxu0
    %v391 = vadd.f32 0.0, %v390
    %v392 = vpop.f32.mrf.mxu0
    %393 = vmatprep.mubr.f32.mxu0 0.0
    %394 = vmatmul.mubr.f32.gmra.mxu0 %v235
    %v395 = vpop.f32.mrf.mxu0
    %v396 = vadd.f32 0.0, %v395
    %v397 = vpop.f32.mrf.mxu0
    %398 = vmatprep.mubr.f32.mxu0 0.0
    %399 = vmatmul.mubr.f32.gmra.mxu0 %v240
    %v400 = vpop.f32.mrf.mxu0
    %v401 = vadd.f32 0.0, %v400
    %v402 = vpop.f32.mrf.mxu0
    %403 = vmatprep.mubr.f32.mxu0 0.0
    %404 = vmatmul.mubr.f32.gmra.mxu0 %v245
    %v405 = vpop.f32.mrf.mxu0
    %v406 = vadd.f32 0.0, %v405
    %v407 = vpop.f32.mrf.mxu0
    %408 = vmatprep.mubr.f32.mxu0 0.0
    %409 = vmatmul.mubr.f32.gmra.mxu0 %v250
    %v410 = vpop.f32.mrf.mxu0
    %v411 = vadd.f32 0.0, %v410
    %v412 = vpop.f32.mrf.mxu0
    %413 = vmatprep.mubr.f32.mxu0 0.0
    %414 = vmatmul.mubr.f32.gmra.mxu0 %v255
    %v415 = vpop.f32.mrf.mxu0
    %v416 = vadd.f32 0.0, %v415
    %v417 = vpop.f32.mrf.mxu0
    %418 = vmatprep.mubr.f32.mxu0 0.0
    %419 = vmatmul.mubr.f32.gmra.mxu0 %v260
    %v420 = vpop.f32.mrf.mxu0
    %v421 = vadd.f32 0.0, %v420
    %v422 = vpop.f32.mrf.mxu0
    %423 = vdwg.mxu0
    %424 = vst [vmem:[#allocation10] sm:$0xff] %v346
    %425 = vst [vmem:[#allocation10 + $0x8] sm:$0xff] %v351
    %426 = vst [vmem:[#allocation10 + $0x10] sm:$0xff] %v356
    %427 = vst [vmem:[#allocation10 + $0x18] sm:$0xff] %v361
    %428 = vst [vmem:[#allocation10 + $0x20] sm:$0xff] %v366
    %429 = vst [vmem:[#allocation10 + $0x28] sm:$0xff] %v371
    %430 = vst [vmem:[#allocation10 + $0x30] sm:$0xff] %v376
    %431 = vst [vmem:[#allocation10 + $0x38] sm:$0xff] %v381
    %432 = vst [vmem:[#allocation10 + $0x40] sm:$0xff] %v386
    %433 = vst [vmem:[#allocation10 + $0x48] sm:$0xff] %v391
    %434 = vst [vmem:[#allocation10 + $0x50] sm:$0xff] %v396
    %435 = vst [vmem:[#allocation10 + $0x58] sm:$0xff] %v401
    %436 = vst [vmem:[#allocation10 + $0x60] sm:$0xff] %v406
    %437 = vst [vmem:[#allocation10 + $0x68] sm:$0xff] %v411
    %438 = vst [vmem:[#allocation10 + $0x70] sm:$0xff] %v416
    %439 = vst [vmem:[#allocation10 + $0x78] sm:$0xff] %v421
    %v440 = vld [vmem:[#allocation8] sm:$0xff]
    %v441 = vld [vmem:[#allocation8 + $0x8] sm:$0xff]
    %v442 = vld [vmem:[#allocation8 + $0x10] sm:$0xff]
    %v443 = vld [vmem:[#allocation8 + $0x18] sm:$0xff]
    %v444 = vld [vmem:[#allocation8 + $0x20] sm:$0xff]
    %v445 = vld [vmem:[#allocation8 + $0x28] sm:$0xff]
    %v446 = vld [vmem:[#allocation8 + $0x30] sm:$0xff]
    %v447 = vld [vmem:[#allocation8 + $0x38] sm:$0xff]
    %v448 = vld [vmem:[#allocation8 + $0x40] sm:$0xff]
    %v449 = vld [vmem:[#allocation8 + $0x48] sm:$0xff]
    %v450 = vld [vmem:[#allocation8 + $0x50] sm:$0xff]
    %v451 = vld [vmem:[#allocation8 + $0x58] sm:$0xff]
    %v452 = vld [vmem:[#allocation8 + $0x60] sm:$0xff]
    %v453 = vld [vmem:[#allocation8 + $0x68] sm:$0xff]
    %v454 = vld [vmem:[#allocation8 + $0x70] sm:$0xff]
    %v455 = vld [vmem:[#allocation8 + $0x78] sm:$0xff]
    %456 = vmatprep.subr.mxu0 0.0
    %457 = vmatpush1.msra.mxu0 %v455
    %458 = vmatprep.subr.mxu0 0.0
    %459 = vmatpush1.msra.mxu0 %v454
    %460 = vmatprep.subr.mxu0 0.0
    %461 = vmatpush1.msra.mxu0 %v453
    %462 = vmatprep.subr.mxu0 0.0
    %463 = vmatpush1.msra.mxu0 %v452
    %464 = vmatprep.subr.mxu0 0.0
    %465 = vmatpush1.msra.mxu0 %v451
    %466 = vmatprep.subr.mxu0 0.0
    %467 = vmatpush1.msra.mxu0 %v450
    %468 = vmatprep.subr.mxu0 0.0
    %469 = vmatpush1.msra.mxu0 %v449
    %470 = vmatprep.subr.mxu0 0.0
    %471 = vmatpush1.msra.mxu0 %v448
    %472 = vmatprep.subr.mxu0 0.0
    %473 = vmatpush1.msra.mxu0 %v447
    %474 = vmatprep.subr.mxu0 0.0
    %475 = vmatpush1.msra.mxu0 %v446
    %476 = vmatprep.subr.mxu0 0.0
    %477 = vmatpush1.msra.mxu0 %v445
    %478 = vmatprep.subr.mxu0 0.0
    %479 = vmatpush1.msra.mxu0 %v444
    %480 = vmatprep.subr.mxu0 0.0
    %481 = vmatpush1.msra.mxu0 %v443
    %482 = vmatprep.subr.mxu0 0.0
    %483 = vmatpush1.msra.mxu0 %v442
    %484 = vmatprep.subr.mxu0 0.0
    %485 = vmatpush1.msra.mxu0 %v441
    %486 = vmatprep.subr.mxu0 0.0
    %487 = vmatpush1.msra.mxu0 %v440
    %488 = vmatprep.subr.mxu0 0.0
    %489 = vmatpush2.msra.mxu0 0.0
    %490 = vmatprep.subr.mxu0 0.0
    %491 = vmatpush2.msra.mxu0 0.0
    %492 = vmatprep.subr.mxu0 0.0
    %493 = vmatpush2.msra.mxu0 0.0
    %494 = vmatprep.subr.mxu0 0.0
    %495 = vmatpush2.msra.mxu0 0.0
    %496 = vmatprep.subr.mxu0 0.0
    %497 = vmatpush2.msra.mxu0 0.0
    %498 = vmatprep.subr.mxu0 0.0
    %499 = vmatpush2.msra.mxu0 0.0
    %500 = vmatprep.subr.mxu0 0.0
    %501 = vmatpush2.msra.mxu0 0.0
    %502 = vmatprep.subr.mxu0 0.0
    %503 = vmatpush2.msra.mxu0 0.0
    %504 = vmatprep.subr.mxu0 0.0
    %505 = vmatpush2.msra.mxu0 0.0
    %506 = vmatprep.subr.mxu0 0.0
    %507 = vmatpush2.msra.mxu0 0.0
    %508 = vmatprep.subr.mxu0 0.0
    %509 = vmatpush2.msra.mxu0 0.0
    %510 = vmatprep.subr.mxu0 0.0
    %511 = vmatpush2.msra.mxu0 0.0
    %512 = vmatprep.subr.mxu0 0.0
    %513 = vmatpush2.msra.mxu0 0.0
    %514 = vmatprep.subr.mxu0 0.0
    %515 = vmatpush2.msra.mxu0 0.0
    %516 = vmatprep.subr.mxu0 0.0
    %517 = vmatpush2.msra.mxu0 0.0
    %518 = vmatprep.subr.mxu0 0.0
    %519 = vmatpush2.msra.mxu0 0.0
    %520 = vmatprep.mubr.f32.mxu0 0.0
    %521 = vmatmul.mubr.f32.gmra.mxu0 %v185
    %v522 = vpop.f32.mrf.mxu0
    %v523 = vadd.f32 0.0, %v522
    %v524 = vpop.f32.mrf.mxu0
    %525 = vmatprep.mubr.f32.mxu0 0.0
    %526 = vmatmul.mubr.f32.gmra.mxu0 %v190
    %v527 = vpop.f32.mrf.mxu0
    %v528 = vadd.f32 0.0, %v527
    %v529 = vpop.f32.mrf.mxu0
    %530 = vmatprep.mubr.f32.mxu0 0.0
    %531 = vmatmul.mubr.f32.gmra.mxu0 %v195
    %v532 = vpop.f32.mrf.mxu0
    %v533 = vadd.f32 0.0, %v532
    %v534 = vpop.f32.mrf.mxu0
    %535 = vmatprep.mubr.f32.mxu0 0.0
    %536 = vmatmul.mubr.f32.gmra.mxu0 %v200
    %v537 = vpop.f32.mrf.mxu0
    %v538 = vadd.f32 0.0, %v537
    %v539 = vpop.f32.mrf.mxu0
    %540 = vmatprep.mubr.f32.mxu0 0.0
    %541 = vmatmul.mubr.f32.gmra.mxu0 %v205
    %v542 = vpop.f32.mrf.mxu0
    %v543 = vadd.f32 0.0, %v542
    %v544 = vpop.f32.mrf.mxu0
    %545 = vmatprep.mubr.f32.mxu0 0.0
    %546 = vmatmul.mubr.f32.gmra.mxu0 %v210
    %v547 = vpop.f32.mrf.mxu0
    %v548 = vadd.f32 0.0, %v547
    %v549 = vpop.f32.mrf.mxu0
    %550 = vmatprep.mubr.f32.mxu0 0.0
    %551 = vmatmul.mubr.f32.gmra.mxu0 %v215
    %v552 = vpop.f32.mrf.mxu0
    %v553 = vadd.f32 0.0, %v552
    %v554 = vpop.f32.mrf.mxu0
    %555 = vmatprep.mubr.f32.mxu0 0.0
    %556 = vmatmul.mubr.f32.gmra.mxu0 %v220
    %v557 = vpop.f32.mrf.mxu0
    %v558 = vadd.f32 0.0, %v557
    %v559 = vpop.f32.mrf.mxu0
    %560 = vmatprep.mubr.f32.mxu0 0.0
    %561 = vmatmul.mubr.f32.gmra.mxu0 %v225
    %v562 = vpop.f32.mrf.mxu0
    %v563 = vadd.f32 0.0, %v562
    %v564 = vpop.f32.mrf.mxu0
    %565 = vmatprep.mubr.f32.mxu0 0.0
    %566 = vmatmul.mubr.f32.gmra.mxu0 %v230
    %v567 = vpop.f32.mrf.mxu0
    %v568 = vadd.f32 0.0, %v567
    %v569 = vpop.f32.mrf.mxu0
    %570 = vmatprep.mubr.f32.mxu0 0.0
    %571 = vmatmul.mubr.f32.gmra.mxu0 %v235
    %v572 = vpop.f32.mrf.mxu0
    %v573 = vadd.f32 0.0, %v572
    %v574 = vpop.f32.mrf.mxu0
    %575 = vmatprep.mubr.f32.mxu0 0.0
    %576 = vmatmul.mubr.f32.gmra.mxu0 %v240
    %v577 = vpop.f32.mrf.mxu0
    %v578 = vadd.f32 0.0, %v577
    %v579 = vpop.f32.mrf.mxu0
    %580 = vmatprep.mubr.f32.mxu0 0.0
    %581 = vmatmul.mubr.f32.gmra.mxu0 %v245
    %v582 = vpop.f32.mrf.mxu0
    %v583 = vadd.f32 0.0, %v582
    %v584 = vpop.f32.mrf.mxu0
    %585 = vmatprep.mubr.f32.mxu0 0.0
    %586 = vmatmul.mubr.f32.gmra.mxu0 %v250
    %v587 = vpop.f32.mrf.mxu0
    %v588 = vadd.f32 0.0, %v587
    %v589 = vpop.f32.mrf.mxu0
    %590 = vmatprep.mubr.f32.mxu0 0.0
    %591 = vmatmul.mubr.f32.gmra.mxu0 %v255
    %v592 = vpop.f32.mrf.mxu0
    %v593 = vadd.f32 0.0, %v592
    %v594 = vpop.f32.mrf.mxu0
    %595 = vmatprep.mubr.f32.mxu0 0.0
    %596 = vmatmul.mubr.f32.gmra.mxu0 %v260
    %v597 = vpop.f32.mrf.mxu0
    %v598 = vadd.f32 0.0, %v597
    %v599 = vpop.f32.mrf.mxu0
    %600 = vdwg.mxu0
    %601 = vst [vmem:[#allocation11] sm:$0xff] %v523
    %602 = vst [vmem:[#allocation11 + $0x8] sm:$0xff] %v528
    %603 = vst [vmem:[#allocation11 + $0x10] sm:$0xff] %v533
    %604 = vst [vmem:[#allocation11 + $0x18] sm:$0xff] %v538
    %605 = vst [vmem:[#allocation11 + $0x20] sm:$0xff] %v543
    %606 = vst [vmem:[#allocation11 + $0x28] sm:$0xff] %v548
    %607 = vst [vmem:[#allocation11 + $0x30] sm:$0xff] %v553
    %608 = vst [vmem:[#allocation11 + $0x38] sm:$0xff] %v558
    %609 = vst [vmem:[#allocation11 + $0x40] sm:$0xff] %v563
    %610 = vst [vmem:[#allocation11 + $0x48] sm:$0xff] %v568
    %611 = vst [vmem:[#allocation11 + $0x50] sm:$0xff] %v573
    %612 = vst [vmem:[#allocation11 + $0x58] sm:$0xff] %v578
    %613 = vst [vmem:[#allocation11 + $0x60] sm:$0xff] %v583
    %614 = vst [vmem:[#allocation11 + $0x68] sm:$0xff] %v588
    %615 = vst [vmem:[#allocation11 + $0x70] sm:$0xff] %v593
    %616 = vst [vmem:[#allocation11 + $0x78] sm:$0xff] %v598
    // Predicated region
    $region38: #{tpu_custom_call.1} parent=1 // pred_check
      _
    $region39: #{tpu_custom_call.1} parent=1 // pred_check_branch
      %618 = sbr.rel (0) target = $region41
    $region40: #{tpu_custom_call.1} parent=1 // pred_region
      %s620 = ssub.s32 2048, 2048
      %621 = vsyncadd [#allocation4], %s620
      %s622 = sshll.u32 [#allocation10], 4
      %s623 = int_to_ptr.vmem [resolvable:$true] %s622
      %628 = dma.vmem_to_hbm [thread:$0]  %s623, 2048, %s5, [#allocation4], 128, 128, 8
    $region41: #{tpu_custom_call.1} parent=1 // pred_fallthru
      _
    // Predicated region
    $region42: #{tpu_custom_call.1} parent=1 // pred_check
      _
    $region43: #{tpu_custom_call.1} parent=1 // pred_check_branch
      %630 = sbr.rel (0) target = $region45
    $region44: #{tpu_custom_call.1} parent=1 // pred_region
      %s632 = ssub.s32 2048, 2048
      %633 = vsyncadd [#allocation12], %s632
      %s634 = sshll.u32 [#allocation11], 4
      %s635 = int_to_ptr.vmem [resolvable:$true] %s634
      %640 = dma.vmem_to_hbm [thread:$0]  %s635, 2048, %s6, [#allocation12], 128, 128, 8
    $region45: #{tpu_custom_call.1} parent=1 // pred_fallthru
      _
    // Predicated region
    $region46: #{tpu_custom_call.1} parent=1 // pred_check
      _
    $region47: #{tpu_custom_call.1} parent=1 // pred_check_branch
      %642 = sbr.rel (0) target = $region49
    $region48: #{tpu_custom_call.1} parent=1 // pred_region
      %643 = dma.done [#allocation4], 2048
    $region49: #{tpu_custom_call.1} parent=1 // pred_fallthru
      _
    // Predicated region
    $region50: #{tpu_custom_call.1} parent=1 // pred_check
      _
    $region51: #{tpu_custom_call.1} parent=1 // pred_check_branch
      %645 = sbr.rel (0) target = $region53
    $region52: #{tpu_custom_call.1} parent=1 // pred_region
      %646 = dma.done [#allocation12], 2048
    $region53: #{tpu_custom_call.1} parent=1 // pred_fallthru
      _
    %647 = vsyncpa [#allocation3], 1
    %648 = vsyncpa [#allocation6], 1
    %649 = vsyncpa [#allocation9], 1
    %650 = vsyncpa [#allocation4], 1
    %651 = vsyncpa [#allocation12], 1

// kernel: tpu_custom_call.1
$region0: #{tpu_custom_call.1}
  #allocation0 [shape = 'u32[]', space=smem, size = 0x4, offset = 0x4, fixed_abs, tag = 'smem constant byte address 0x4 - core index']
  #allocation1 [shape = 'u32[144,128]{1,0:T(1,128)}', space=vmem, size = 0x12000, scoped, tag = 'internal scratch']
  %s0 = inlined_call_operand.hbm [shape: f32[128,128], index: 0, kind: input, shape index: {}]
  %s1 = inlined_call_operand.hbm [shape: f32[128,128], index: 1, kind: input, shape index: {}]
  %s2 = inlined_call_operand.vmem [shape: f32[1,128], index: 2, kind: input, shape index: {}]
  %s3 = inlined_call_operand.hbm [shape: f32[128,128], index: 3, kind: input, shape index: {}]
  %s4 = inlined_call_operand.hbm [shape: f32[128,128], index: 4, kind: input, shape index: {}]
  %s5 = inlined_call_operand.hbm [shape: f32[128,128], index: 5, kind: output, shape index: {0}]
  %s6 = inlined_call_operand.hbm [shape: f32[128,128], index: 6, kind: output, shape index: {1}]
  %7 = xla_tuple %s5, %s6
  %s8 = sld [smem:[#allocation0]]
  $region54: #{tpu_custom_call.1} parent=0
    _
  %s10 = ssub.s32 1, %s8
  %s11 = scalar_select 0, %s10, %s8
  $region1: #{tpu_custom_call.1} parent=0
    #allocation2 [shape = 'u8[65536]{0}', space=vmem, size = 0x10000, scoped, tag = 'input window, operand 0, single buffered']
    #allocation3 [shape = 's32[1]{0}', space=sflag, size = 0x4, scoped, tag = 'scoped memory for tpu_custom_call.1']
    #allocation4 [shape = 's32[1]{0}', space=sflag, size = 0x4, scoped, tag = 'scoped memory for tpu_custom_call.1']
    #allocation5 [shape = 'u8[65536]{0}', space=vmem, size = 0x10000, scoped, tag = 'input window, operand 1, single buffered']
    #allocation6 [shape = 's32[1]{0}', space=sflag, size = 0x4, scoped, tag = 'scoped memory for tpu_custom_call.1']
    #allocation7 [shape = 'u8[65536]{0}', space=vmem, size = 0x10000, scoped, tag = 'input window, operand 3, single buffered']
    #allocation8 [shape = 'u8[65536]{0}', space=vmem, size = 0x10000, scoped, tag = 'input window, operand 4, single buffered']
    #allocation9 [shape = 's32[1]{0}', space=sflag, size = 0x4, scoped, tag = 'scoped memory for tpu_custom_call.1']
    #allocation10 [shape = 'u8[65536]{0}', space=vmem, size = 0x10000, scoped, tag = 'output window, operand 0, single buffered']
    #allocation11 [shape = 'u8[65536]{0}', space=vmem, size = 0x10000, scoped, tag = 'output window, operand 1, single buffered']
    #allocation12 [shape = 's32[1]{0}', space=sflag, size = 0x4, scoped, tag = 'scoped memory for tpu_custom_call.1']
    %12 = vsyncpa [#allocation3], 0
    %13 = vsyncpa [#allocation6], 0
    %14 = vsyncpa [#allocation9], 0
    %15 = vsyncpa [#allocation4], 0
    %16 = vsyncpa [#allocation12], 0
    // Predicated region
    $region2: #{tpu_custom_call.1} parent=1 // pred_check
      _
    $region3: #{tpu_custom_call.1} parent=1 // pred_check_branch
      %18 = sbr.rel (0) target = $region5
    $region4: #{tpu_custom_call.1} parent=1 // pred_region
      %s20 = ssub.s32 2048, 2048
      %21 = vsyncadd [#allocation3], %s20
      %s22 = sshll.u32 [#allocation2], 4
      %s23 = int_to_ptr.vmem [resolvable:$true] %s22
      %28 = dma.hbm_to_vmem [thread:$0]  %s0, 2048, %s23, [#allocation3], 128, 128, 8
    $region5: #{tpu_custom_call.1} parent=1 // pred_fallthru
      _
    // Predicated region
    $region6: #{tpu_custom_call.1} parent=1 // pred_check
      _
    $region7: #{tpu_custom_call.1} parent=1 // pred_check_branch
      %30 = sbr.rel (0) target = $region9
    $region8: #{tpu_custom_call.1} parent=1 // pred_region
      %s32 = ssub.s32 2048, 2048
      %33 = vsyncadd [#allocation6], %s32
      %s34 = sshll.u32 [#allocation5], 4
      %s35 = int_to_ptr.vmem [resolvable:$true] %s34
      %40 = dma.hbm_to_vmem [thread:$0]  %s1, 2048, %s35, [#allocation6], 128, 128, 8
    $region9: #{tpu_custom_call.1} parent=1 // pred_fallthru
      _
    // Predicated region
    $region10: #{tpu_custom_call.1} parent=1 // pred_check
      _
    $region11: #{tpu_custom_call.1} parent=1 // pred_check_branch
      %42 = sbr.rel (0) target = $region13
    $region12: #{tpu_custom_call.1} parent=1 // pred_region
      _
    $region13: #{tpu_custom_call.1} parent=1 // pred_fallthru
      _
    // Predicated region
    $region14: #{tpu_custom_call.1} parent=1 // pred_check
      _
    $region15: #{tpu_custom_call.1} parent=1 // pred_check_branch
      %44 = sbr.rel (0) target = $region17
    $region16: #{tpu_custom_call.1} parent=1 // pred_region
      %s46 = ssub.s32 2048, 2048
      %47 = vsyncadd [#allocation6], %s46
      %s48 = sshll.u32 [#allocation7], 4
      %s49 = int_to_ptr.vmem [resolvable:$true] %s48
      %54 = dma.hbm_to_vmem [thread:$0]  %s3, 2048, %s49, [#allocation6], 128, 128, 8
    $region17: #{tpu_custom_call.1} parent=1 // pred_fallthru
      _
    // Predicated region
    $region18: #{tpu_custom_call.1} parent=1 // pred_check
      _
    $region19: #{tpu_custom_call.1} parent=1 // pred_check_branch
      %56 = sbr.rel (0) target = $region21
    $region20: #{tpu_custom_call.1} parent=1 // pred_region
      %s58 = ssub.s32 2048, 2048
      %59 = vsyncadd [#allocation9], %s58
      %s60 = sshll.u32 [#allocation8], 4
      %s61 = int_to_ptr.vmem [resolvable:$true] %s60
      %66 = dma.hbm_to_vmem [thread:$0]  %s4, 2048, %s61, [#allocation9], 128, 128, 8
    $region21: #{tpu_custom_call.1} parent=1 // pred_fallthru
      _
    // Predicated region
    $region22: #{tpu_custom_call.1} parent=1 // pred_check
      _
    $region23: #{tpu_custom_call.1} parent=1 // pred_check_branch
      %68 = sbr.rel (0) target = $region25
    $region24: #{tpu_custom_call.1} parent=1 // pred_region
      %69 = dma.done [#allocation3], 2048
    $region25: #{tpu_custom_call.1} parent=1 // pred_fallthru
      _
    // Predicated region
    $region26: #{tpu_custom_call.1} parent=1 // pred_check
      _
    $region27: #{tpu_custom_call.1} parent=1 // pred_check_branch
      %71 = sbr.rel (0) target = $region29
    $region28: #{tpu_custom_call.1} parent=1 // pred_region
      %72 = dma.done [#allocation6], 2048
    $region29: #{tpu_custom_call.1} parent=1 // pred_fallthru
      _
    // Predicated region
    $region30: #{tpu_custom_call.1} parent=1 // pred_check
      _
    $region31: #{tpu_custom_call.1} parent=1 // pred_check_branch
      %74 = sbr.rel (0) target = $region33
    $region32: #{tpu_custom_call.1} parent=1 // pred_region
      %75 = dma.done [#allocation6], 2048
    $region33: #{tpu_custom_call.1} parent=1 // pred_fallthru
      _
    // Predicated region
    $region34: #{tpu_custom_call.1} parent=1 // pred_check
      _
    $region35: #{tpu_custom_call.1} parent=1 // pred_check_branch
      %77 = sbr.rel (0) target = $region37
    $region36: #{tpu_custom_call.1} parent=1 // pred_region
      %78 = dma.done [#allocation9], 2048
    $region37: #{tpu_custom_call.1} parent=1 // pred_fallthru
      _
    %v79 = vld [vmem:[#allocation2] sm:$0xff]
    %v80 = vld [vmem:[#allocation2 + $0x8] sm:$0xff]
    %v81 = vld [vmem:[#allocation2 + $0x10] sm:$0xff]
    %v82 = vld [vmem:[#allocation2 + $0x18] sm:$0xff]
    %v83 = vld [vmem:[#allocation2 + $0x20] sm:$0xff]
    %v84 = vld [vmem:[#allocation2 + $0x28] sm:$0xff]
    %v85 = vld [vmem:[#allocation2 + $0x30] sm:$0xff]
    %v86 = vld [vmem:[#allocation2 + $0x38] sm:$0xff]
    %v87 = vld [vmem:[#allocation2 + $0x40] sm:$0xff]
    %v88 = vld [vmem:[#allocation2 + $0x48] sm:$0xff]
    %v89 = vld [vmem:[#allocation2 + $0x50] sm:$0xff]
    %v90 = vld [vmem:[#allocation2 + $0x58] sm:$0xff]
    %v91 = vld [vmem:[#allocation2 + $0x60] sm:$0xff]
    %v92 = vld [vmem:[#allocation2 + $0x68] sm:$0xff]
    %v93 = vld [vmem:[#allocation2 + $0x70] sm:$0xff]
    %v94 = vld [vmem:[#allocation2 + $0x78] sm:$0xff]
    %v95 = vld [vmem:[#allocation5] sm:$0xff]
    %v96 = vld [vmem:[#allocation5 + $0x8] sm:$0xff]
    %v97 = vld [vmem:[#allocation5 + $0x10] sm:$0xff]
    %v98 = vld [vmem:[#allocation5 + $0x18] sm:$0xff]
    %v99 = vld [vmem:[#allocation5 + $0x20] sm:$0xff]
    %v100 = vld [vmem:[#allocation5 + $0x28] sm:$0xff]
    %v101 = vld [vmem:[#allocation5 + $0x30] sm:$0xff]
    %v102 = vld [vmem:[#allocation5 + $0x38] sm:$0xff]
    %v103 = vld [vmem:[#allocation5 + $0x40] sm:$0xff]
    %v104 = vld [vmem:[#allocation5 + $0x48] sm:$0xff]
    %v105 = vld [vmem:[#allocation5 + $0x50] sm:$0xff]
    %v106 = vld [vmem:[#allocation5 + $0x58] sm:$0xff]
    %v107 = vld [vmem:[#allocation5 + $0x60] sm:$0xff]
    %v108 = vld [vmem:[#allocation5 + $0x68] sm:$0xff]
    %v109 = vld [vmem:[#allocation5 + $0x70] sm:$0xff]
    %v110 = vld [vmem:[#allocation5 + $0x78] sm:$0xff]
    %v111 = vld [vmem:[%s2] sm:$0x1]
    %v113 = vlaneseq
    %v114 = vshrl.u32 %v113, 7
    %v115 = vsub.s32 0, %v114
    %v116 = vrot.slane %v111, %v115
    %118 = vmatprep.subr.mxu0 0.0
    %119 = vmatpush1.msra.mxu0 %v110
    %120 = vmatprep.subr.mxu0 0.0
    %121 = vmatpush1.msra.mxu0 %v109
    %122 = vmatprep.subr.mxu0 0.0
    %123 = vmatpush1.msra.mxu0 %v108
    %124 = vmatprep.subr.mxu0 0.0
    %125 = vmatpush1.msra.mxu0 %v107
    %126 = vmatprep.subr.mxu0 0.0
    %127 = vmatpush1.msra.mxu0 %v106
    %128 = vmatprep.subr.mxu0 0.0
    %129 = vmatpush1.msra.mxu0 %v105
    %130 = vmatprep.subr.mxu0 0.0
    %131 = vmatpush1.msra.mxu0 %v104
    %132 = vmatprep.subr.mxu0 0.0
    %133 = vmatpush1.msra.mxu0 %v103
    %134 = vmatprep.subr.mxu0 0.0
    %135 = vmatpush1.msra.mxu0 %v102
    %136 = vmatprep.subr.mxu0 0.0
    %137 = vmatpush1.msra.mxu0 %v101
    %138 = vmatprep.subr.mxu0 0.0
    %139 = vmatpush1.msra.mxu0 %v100
    %140 = vmatprep.subr.mxu0 0.0
    %141 = vmatpush1.msra.mxu0 %v99
    %142 = vmatprep.subr.mxu0 0.0
    %143 = vmatpush1.msra.mxu0 %v98
    %144 = vmatprep.subr.mxu0 0.0
    %145 = vmatpush1.msra.mxu0 %v97
    %146 = vmatprep.subr.mxu0 0.0
    %147 = vmatpush1.msra.mxu0 %v96
    %148 = vmatprep.subr.mxu0 0.0
    %149 = vmatpush1.msra.mxu0 %v95
    %150 = vmatprep.subr.mxu0 0.0
    %151 = vmatpush2.msra.mxu0 0.0
    %152 = vmatprep.subr.mxu0 0.0
    %153 = vmatpush2.msra.mxu0 0.0
    %154 = vmatprep.subr.mxu0 0.0
    %155 = vmatpush2.msra.mxu0 0.0
    %156 = vmatprep.subr.mxu0 0.0
    %157 = vmatpush2.msra.mxu0 0.0
    %158 = vmatprep.subr.mxu0 0.0
    %159 = vmatpush2.msra.mxu0 0.0
    %160 = vmatprep.subr.mxu0 0.0
    %161 = vmatpush2.msra.mxu0 0.0
    %162 = vmatprep.subr.mxu0 0.0
    %163 = vmatpush2.msra.mxu0 0.0
    %164 = vmatprep.subr.mxu0 0.0
    %165 = vmatpush2.msra.mxu0 0.0
    %166 = vmatprep.subr.mxu0 0.0
    %167 = vmatpush2.msra.mxu0 0.0
    %168 = vmatprep.subr.mxu0 0.0
    %169 = vmatpush2.msra.mxu0 0.0
    %170 = vmatprep.subr.mxu0 0.0
    %171 = vmatpush2.msra.mxu0 0.0
    %172 = vmatprep.subr.mxu0 0.0
    %173 = vmatpush2.msra.mxu0 0.0
    %174 = vmatprep.subr.mxu0 0.0
    %175 = vmatpush2.msra.mxu0 0.0
    %176 = vmatprep.subr.mxu0 0.0
    %177 = vmatpush2.msra.mxu0 0.0
    %178 = vmatprep.subr.mxu0 0.0
    %179 = vmatpush2.msra.mxu0 0.0
    %180 = vmatprep.subr.mxu0 0.0
    %181 = vmatpush2.msra.mxu0 0.0
    %182 = vmatprep.mubr.f32.mxu0 0.0
    %183 = vmatmul.mubr.f32.gmra.mxu0 %v79
    %v184 = vpop.f32.mrf.mxu0
    %v185 = vadd.f32 %v116, %v184
    %v186 = vpop.f32.mrf.mxu0
    %187 = vmatprep.mubr.f32.mxu0 0.0
    %188 = vmatmul.mubr.f32.gmra.mxu0 %v80
    %v189 = vpop.f32.mrf.mxu0
    %v190 = vadd.f32 %v116, %v189
    %v191 = vpop.f32.mrf.mxu0
    %192 = vmatprep.mubr.f32.mxu0 0.0
    %193 = vmatmul.mubr.f32.gmra.mxu0 %v81
    %v194 = vpop.f32.mrf.mxu0
    %v195 = vadd.f32 %v116, %v194
    %v196 = vpop.f32.mrf.mxu0
    %197 = vmatprep.mubr.f32.mxu0 0.0
    %198 = vmatmul.mubr.f32.gmra.mxu0 %v82
    %v199 = vpop.f32.mrf.mxu0
    %v200 = vadd.f32 %v116, %v199
    %v201 = vpop.f32.mrf.mxu0
    %202 = vmatprep.mubr.f32.mxu0 0.0
    %203 = vmatmul.mubr.f32.gmra.mxu0 %v83
    %v204 = vpop.f32.mrf.mxu0
    %v205 = vadd.f32 %v116, %v204
    %v206 = vpop.f32.mrf.mxu0
    %207 = vmatprep.mubr.f32.mxu0 0.0
    %208 = vmatmul.mubr.f32.gmra.mxu0 %v84
    %v209 = vpop.f32.mrf.mxu0
    %v210 = vadd.f32 %v116, %v209
    %v211 = vpop.f32.mrf.mxu0
    %212 = vmatprep.mubr.f32.mxu0 0.0
    %213 = vmatmul.mubr.f32.gmra.mxu0 %v85
    %v214 = vpop.f32.mrf.mxu0
    %v215 = vadd.f32 %v116, %v214
    %v216 = vpop.f32.mrf.mxu0
    %217 = vmatprep.mubr.f32.mxu0 0.0
    %218 = vmatmul.mubr.f32.gmra.mxu0 %v86
    %v219 = vpop.f32.mrf.mxu0
    %v220 = vadd.f32 %v116, %v219
    %v221 = vpop.f32.mrf.mxu0
    %222 = vmatprep.mubr.f32.mxu0 0.0
    %223 = vmatmul.mubr.f32.gmra.mxu0 %v87
    %v224 = vpop.f32.mrf.mxu0
    %v225 = vadd.f32 %v116, %v224
    %v226 = vpop.f32.mrf.mxu0
    %227 = vmatprep.mubr.f32.mxu0 0.0
    %228 = vmatmul.mubr.f32.gmra.mxu0 %v88
    %v229 = vpop.f32.mrf.mxu0
    %v230 = vadd.f32 %v116, %v229
    %v231 = vpop.f32.mrf.mxu0
    %232 = vmatprep.mubr.f32.mxu0 0.0
    %233 = vmatmul.mubr.f32.gmra.mxu0 %v89
    %v234 = vpop.f32.mrf.mxu0
    %v235 = vadd.f32 %v116, %v234
    %v236 = vpop.f32.mrf.mxu0
    %237 = vmatprep.mubr.f32.mxu0 0.0
    %238 = vmatmul.mubr.f32.gmra.mxu0 %v90
    %v239 = vpop.f32.mrf.mxu0
    %v240 = vadd.f32 %v116, %v239
    %v241 = vpop.f32.mrf.mxu0
    %242 = vmatprep.mubr.f32.mxu0 0.0
    %243 = vmatmul.mubr.f32.gmra.mxu0 %v91
    %v244 = vpop.f32.mrf.mxu0
    %v245 = vadd.f32 %v116, %v244
    %v246 = vpop.f32.mrf.mxu0
    %247 = vmatprep.mubr.f32.mxu0 0.0
    %248 = vmatmul.mubr.f32.gmra.mxu0 %v92
    %v249 = vpop.f32.mrf.mxu0
    %v250 = vadd.f32 %v116, %v249
    %v251 = vpop.f32.mrf.mxu0
    %252 = vmatprep.mubr.f32.mxu0 0.0
    %253 = vmatmul.mubr.f32.gmra.mxu0 %v93
    %v254 = vpop.f32.mrf.mxu0
    %v255 = vadd.f32 %v116, %v254
    %v256 = vpop.f32.mrf.mxu0
    %257 = vmatprep.mubr.f32.mxu0 0.0
    %258 = vmatmul.mubr.f32.gmra.mxu0 %v94
    %v259 = vpop.f32.mrf.mxu0
    %v260 = vadd.f32 %v116, %v259
    %v261 = vpop.f32.mrf.mxu0
    %262 = vdwg.mxu0
    %v263 = vld [vmem:[#allocation7] sm:$0xff]
    %v264 = vld [vmem:[#allocation7 + $0x8] sm:$0xff]
    %v265 = vld [vmem:[#allocation7 + $0x10] sm:$0xff]
    %v266 = vld [vmem:[#allocation7 + $0x18] sm:$0xff]
    %v267 = vld [vmem:[#allocation7 + $0x20] sm:$0xff]
    %v268 = vld [vmem:[#allocation7 + $0x28] sm:$0xff]
    %v269 = vld [vmem:[#allocation7 + $0x30] sm:$0xff]
    %v270 = vld [vmem:[#allocation7 + $0x38] sm:$0xff]
    %v271 = vld [vmem:[#allocation7 + $0x40] sm:$0xff]
    %v272 = vld [vmem:[#allocation7 + $0x48] sm:$0xff]
    %v273 = vld [vmem:[#allocation7 + $0x50] sm:$0xff]
    %v274 = vld [vmem:[#allocation7 + $0x58] sm:$0xff]
    %v275 = vld [vmem:[#allocation7 + $0x60] sm:$0xff]
    %v276 = vld [vmem:[#allocation7 + $0x68] sm:$0xff]
    %v277 = vld [vmem:[#allocation7 + $0x70] sm:$0xff]
    %v278 = vld [vmem:[#allocation7 + $0x78] sm:$0xff]
    %279 = vmatprep.subr.mxu0 0.0
    %280 = vmatpush1.msra.mxu0 %v278
    %281 = vmatprep.subr.mxu0 0.0
    %282 = vmatpush1.msra.mxu0 %v277
    %283 = vmatprep.subr.mxu0 0.0
    %284 = vmatpush1.msra.mxu0 %v276
    %285 = vmatprep.subr.mxu0 0.0
    %286 = vmatpush1.msra.mxu0 %v275
    %287 = vmatprep.subr.mxu0 0.0
    %288 = vmatpush1.msra.mxu0 %v274
    %289 = vmatprep.subr.mxu0 0.0
    %290 = vmatpush1.msra.mxu0 %v273
    %291 = vmatprep.subr.mxu0 0.0
    %292 = vmatpush1.msra.mxu0 %v272
    %293 = vmatprep.subr.mxu0 0.0
    %294 = vmatpush1.msra.mxu0 %v271
    %295 = vmatprep.subr.mxu0 0.0
    %296 = vmatpush1.msra.mxu0 %v270
    %297 = vmatprep.subr.mxu0 0.0
    %298 = vmatpush1.msra.mxu0 %v269
    %299 = vmatprep.subr.mxu0 0.0
    %300 = vmatpush1.msra.mxu0 %v268
    %301 = vmatprep.subr.mxu0 0.0
    %302 = vmatpush1.msra.mxu0 %v267
    %303 = vmatprep.subr.mxu0 0.0
    %304 = vmatpush1.msra.mxu0 %v266
    %305 = vmatprep.subr.mxu0 0.0
    %306 = vmatpush1.msra.mxu0 %v265
    %307 = vmatprep.subr.mxu0 0.0
    %308 = vmatpush1.msra.mxu0 %v264
    %309 = vmatprep.subr.mxu0 0.0
    %310 = vmatpush1.msra.mxu0 %v263
    %311 = vmatprep.subr.mxu0 0.0
    %312 = vmatpush2.msra.mxu0 0.0
    %313 = vmatprep.subr.mxu0 0.0
    %314 = vmatpush2.msra.mxu0 0.0
    %315 = vmatprep.subr.mxu0 0.0
    %316 = vmatpush2.msra.mxu0 0.0
    %317 = vmatprep.subr.mxu0 0.0
    %318 = vmatpush2.msra.mxu0 0.0
    %319 = vmatprep.subr.mxu0 0.0
    %320 = vmatpush2.msra.mxu0 0.0
    %321 = vmatprep.subr.mxu0 0.0
    %322 = vmatpush2.msra.mxu0 0.0
    %323 = vmatprep.subr.mxu0 0.0
    %324 = vmatpush2.msra.mxu0 0.0
    %325 = vmatprep.subr.mxu0 0.0
    %326 = vmatpush2.msra.mxu0 0.0
    %327 = vmatprep.subr.mxu0 0.0
    %328 = vmatpush2.msra.mxu0 0.0
    %329 = vmatprep.subr.mxu0 0.0
    %330 = vmatpush2.msra.mxu0 0.0
    %331 = vmatprep.subr.mxu0 0.0
    %332 = vmatpush2.msra.mxu0 0.0
    %333 = vmatprep.subr.mxu0 0.0
    %334 = vmatpush2.msra.mxu0 0.0
    %335 = vmatprep.subr.mxu0 0.0
    %336 = vmatpush2.msra.mxu0 0.0
    %337 = vmatprep.subr.mxu0 0.0
    %338 = vmatpush2.msra.mxu0 0.0
    %339 = vmatprep.subr.mxu0 0.0
    %340 = vmatpush2.msra.mxu0 0.0
    %341 = vmatprep.subr.mxu0 0.0
    %342 = vmatpush2.msra.mxu0 0.0
    %343 = vmatprep.mubr.f32.mxu0 0.0
    %344 = vmatmul.mubr.f32.gmra.mxu0 %v185
    %v345 = vpop.f32.mrf.mxu0
    %v346 = vadd.f32 0.0, %v345
    %v347 = vpop.f32.mrf.mxu0
    %348 = vmatprep.mubr.f32.mxu0 0.0
    %349 = vmatmul.mubr.f32.gmra.mxu0 %v190
    %v350 = vpop.f32.mrf.mxu0
    %v351 = vadd.f32 0.0, %v350
    %v352 = vpop.f32.mrf.mxu0
    %353 = vmatprep.mubr.f32.mxu0 0.0
    %354 = vmatmul.mubr.f32.gmra.mxu0 %v195
    %v355 = vpop.f32.mrf.mxu0
    %v356 = vadd.f32 0.0, %v355
    %v357 = vpop.f32.mrf.mxu0
    %358 = vmatprep.mubr.f32.mxu0 0.0
    %359 = vmatmul.mubr.f32.gmra.mxu0 %v200
    %v360 = vpop.f32.mrf.mxu0
    %v361 = vadd.f32 0.0, %v360
    %v362 = vpop.f32.mrf.mxu0
    %363 = vmatprep.mubr.f32.mxu0 0.0
    %364 = vmatmul.mubr.f32.gmra.mxu0 %v205
    %v365 = vpop.f32.mrf.mxu0
    %v366 = vadd.f32 0.0, %v365
    %v367 = vpop.f32.mrf.mxu0
    %368 = vmatprep.mubr.f32.mxu0 0.0
    %369 = vmatmul.mubr.f32.gmra.mxu0 %v210
    %v370 = vpop.f32.mrf.mxu0
    %v371 = vadd.f32 0.0, %v370
    %v372 = vpop.f32.mrf.mxu0
    %373 = vmatprep.mubr.f32.mxu0 0.0
    %374 = vmatmul.mubr.f32.gmra.mxu0 %v215
    %v375 = vpop.f32.mrf.mxu0
    %v376 = vadd.f32 0.0, %v375
    %v377 = vpop.f32.mrf.mxu0
    %378 = vmatprep.mubr.f32.mxu0 0.0
    %379 = vmatmul.mubr.f32.gmra.mxu0 %v220
    %v380 = vpop.f32.mrf.mxu0
    %v381 = vadd.f32 0.0, %v380
    %v382 = vpop.f32.mrf.mxu0
    %383 = vmatprep.mubr.f32.mxu0 0.0
    %384 = vmatmul.mubr.f32.gmra.mxu0 %v225
    %v385 = vpop.f32.mrf.mxu0
    %v386 = vadd.f32 0.0, %v385
    %v387 = vpop.f32.mrf.mxu0
    %388 = vmatprep.mubr.f32.mxu0 0.0
    %389 = vmatmul.mubr.f32.gmra.mxu0 %v230
    %v390 = vpop.f32.mrf.mxu0
    %v391 = vadd.f32 0.0, %v390
    %v392 = vpop.f32.mrf.mxu0
    %393 = vmatprep.mubr.f32.mxu0 0.0
    %394 = vmatmul.mubr.f32.gmra.mxu0 %v235
    %v395 = vpop.f32.mrf.mxu0
    %v396 = vadd.f32 0.0, %v395
    %v397 = vpop.f32.mrf.mxu0
    %398 = vmatprep.mubr.f32.mxu0 0.0
    %399 = vmatmul.mubr.f32.gmra.mxu0 %v240
    %v400 = vpop.f32.mrf.mxu0
    %v401 = vadd.f32 0.0, %v400
    %v402 = vpop.f32.mrf.mxu0
    %403 = vmatprep.mubr.f32.mxu0 0.0
    %404 = vmatmul.mubr.f32.gmra.mxu0 %v245
    %v405 = vpop.f32.mrf.mxu0
    %v406 = vadd.f32 0.0, %v405
    %v407 = vpop.f32.mrf.mxu0
    %408 = vmatprep.mubr.f32.mxu0 0.0
    %409 = vmatmul.mubr.f32.gmra.mxu0 %v250
    %v410 = vpop.f32.mrf.mxu0
    %v411 = vadd.f32 0.0, %v410
    %v412 = vpop.f32.mrf.mxu0
    %413 = vmatprep.mubr.f32.mxu0 0.0
    %414 = vmatmul.mubr.f32.gmra.mxu0 %v255
    %v415 = vpop.f32.mrf.mxu0
    %v416 = vadd.f32 0.0, %v415
    %v417 = vpop.f32.mrf.mxu0
    %418 = vmatprep.mubr.f32.mxu0 0.0
    %419 = vmatmul.mubr.f32.gmra.mxu0 %v260
    %v420 = vpop.f32.mrf.mxu0
    %v421 = vadd.f32 0.0, %v420
    %v422 = vpop.f32.mrf.mxu0
    %423 = vdwg.mxu0
    %424 = vst [vmem:[#allocation10] sm:$0xff] %v346
    %425 = vst [vmem:[#allocation10 + $0x8] sm:$0xff] %v351
    %426 = vst [vmem:[#allocation10 + $0x10] sm:$0xff] %v356
    %427 = vst [vmem:[#allocation10 + $0x18] sm:$0xff] %v361
    %428 = vst [vmem:[#allocation10 + $0x20] sm:$0xff] %v366
    %429 = vst [vmem:[#allocation10 + $0x28] sm:$0xff] %v371
    %430 = vst [vmem:[#allocation10 + $0x30] sm:$0xff] %v376
    %431 = vst [vmem:[#allocation10 + $0x38] sm:$0xff] %v381
    %432 = vst [vmem:[#allocation10 + $0x40] sm:$0xff] %v386
    %433 = vst [vmem:[#allocation10 + $0x48] sm:$0xff] %v391
    %434 = vst [vmem:[#allocation10 + $0x50] sm:$0xff] %v396
    %435 = vst [vmem:[#allocation10 + $0x58] sm:$0xff] %v401
    %436 = vst [vmem:[#allocation10 + $0x60] sm:$0xff] %v406
    %437 = vst [vmem:[#allocation10 + $0x68] sm:$0xff] %v411
    %438 = vst [vmem:[#allocation10 + $0x70] sm:$0xff] %v416
    %439 = vst [vmem:[#allocation10 + $0x78] sm:$0xff] %v421
    %v440 = vld [vmem:[#allocation8] sm:$0xff]
    %v441 = vld [vmem:[#allocation8 + $0x8] sm:$0xff]
    %v442 = vld [vmem:[#allocation8 + $0x10] sm:$0xff]
    %v443 = vld [vmem:[#allocation8 + $0x18] sm:$0xff]
    %v444 = vld [vmem:[#allocation8 + $0x20] sm:$0xff]
    %v445 = vld [vmem:[#allocation8 + $0x28] sm:$0xff]
    %v446 = vld [vmem:[#allocation8 + $0x30] sm:$0xff]
    %v447 = vld [vmem:[#allocation8 + $0x38] sm:$0xff]
    %v448 = vld [vmem:[#allocation8 + $0x40] sm:$0xff]
    %v449 = vld [vmem:[#allocation8 + $0x48] sm:$0xff]
    %v450 = vld [vmem:[#allocation8 + $0x50] sm:$0xff]
    %v451 = vld [vmem:[#allocation8 + $0x58] sm:$0xff]
    %v452 = vld [vmem:[#allocation8 + $0x60] sm:$0xff]
    %v453 = vld [vmem:[#allocation8 + $0x68] sm:$0xff]
    %v454 = vld [vmem:[#allocation8 + $0x70] sm:$0xff]
    %v455 = vld [vmem:[#allocation8 + $0x78] sm:$0xff]
    %456 = vmatprep.subr.mxu0 0.0
    %457 = vmatpush1.msra.mxu0 %v455
    %458 = vmatprep.subr.mxu0 0.0
    %459 = vmatpush1.msra.mxu0 %v454
    %460 = vmatprep.subr.mxu0 0.0
    %461 = vmatpush1.msra.mxu0 %v453
    %462 = vmatprep.subr.mxu0 0.0
    %463 = vmatpush1.msra.mxu0 %v452
    %464 = vmatprep.subr.mxu0 0.0
    %465 = vmatpush1.msra.mxu0 %v451
    %466 = vmatprep.subr.mxu0 0.0
    %467 = vmatpush1.msra.mxu0 %v450
    %468 = vmatprep.subr.mxu0 0.0
    %469 = vmatpush1.msra.mxu0 %v449
    %470 = vmatprep.subr.mxu0 0.0
    %471 = vmatpush1.msra.mxu0 %v448
    %472 = vmatprep.subr.mxu0 0.0
    %473 = vmatpush1.msra.mxu0 %v447
    %474 = vmatprep.subr.mxu0 0.0
    %475 = vmatpush1.msra.mxu0 %v446
    %476 = vmatprep.subr.mxu0 0.0
    %477 = vmatpush1.msra.mxu0 %v445
    %478 = vmatprep.subr.mxu0 0.0
    %479 = vmatpush1.msra.mxu0 %v444
    %480 = vmatprep.subr.mxu0 0.0
    %481 = vmatpush1.msra.mxu0 %v443
    %482 = vmatprep.subr.mxu0 0.0
    %483 = vmatpush1.msra.mxu0 %v442
    %484 = vmatprep.subr.mxu0 0.0
    %485 = vmatpush1.msra.mxu0 %v441
    %486 = vmatprep.subr.mxu0 0.0
    %487 = vmatpush1.msra.mxu0 %v440
    %488 = vmatprep.subr.mxu0 0.0
    %489 = vmatpush2.msra.mxu0 0.0
    %490 = vmatprep.subr.mxu0 0.0
    %491 = vmatpush2.msra.mxu0 0.0
    %492 = vmatprep.subr.mxu0 0.0
    %493 = vmatpush2.msra.mxu0 0.0
    %494 = vmatprep.subr.mxu0 0.0
    %495 = vmatpush2.msra.mxu0 0.0
    %496 = vmatprep.subr.mxu0 0.0
    %497 = vmatpush2.msra.mxu0 0.0
    %498 = vmatprep.subr.mxu0 0.0
    %499 = vmatpush2.msra.mxu0 0.0
    %500 = vmatprep.subr.mxu0 0.0
    %501 = vmatpush2.msra.mxu0 0.0
    %502 = vmatprep.subr.mxu0 0.0
    %503 = vmatpush2.msra.mxu0 0.0
    %504 = vmatprep.subr.mxu0 0.0
    %505 = vmatpush2.msra.mxu0 0.0
    %506 = vmatprep.subr.mxu0 0.0
    %507 = vmatpush2.msra.mxu0 0.0
    %508 = vmatprep.subr.mxu0 0.0
    %509 = vmatpush2.msra.mxu0 0.0
    %510 = vmatprep.subr.mxu0 0.0
    %511 = vmatpush2.msra.mxu0 0.0
    %512 = vmatprep.subr.mxu0 0.0
    %513 = vmatpush2.msra.mxu0 0.0
    %514 = vmatprep.subr.mxu0 0.0
    %515 = vmatpush2.msra.mxu0 0.0
    %516 = vmatprep.subr.mxu0 0.0
    %517 = vmatpush2.msra.mxu0 0.0
    %518 = vmatprep.subr.mxu0 0.0
    %519 = vmatpush2.msra.mxu0 0.0
    %520 = vmatprep.mubr.f32.mxu0 0.0
    %521 = vmatmul.mubr.f32.gmra.mxu0 %v185
    %v522 = vpop.f32.mrf.mxu0
    %v523 = vadd.f32 0.0, %v522
    %v524 = vpop.f32.mrf.mxu0
    %525 = vmatprep.mubr.f32.mxu0 0.0
    %526 = vmatmul.mubr.f32.gmra.mxu0 %v190
    %v527 = vpop.f32.mrf.mxu0
    %v528 = vadd.f32 0.0, %v527
    %v529 = vpop.f32.mrf.mxu0
    %530 = vmatprep.mubr.f32.mxu0 0.0
    %531 = vmatmul.mubr.f32.gmra.mxu0 %v195
    %v532 = vpop.f32.mrf.mxu0
    %v533 = vadd.f32 0.0, %v532
    %v534 = vpop.f32.mrf.mxu0
    %535 = vmatprep.mubr.f32.mxu0 0.0
    %536 = vmatmul.mubr.f32.gmra.mxu0 %v200
    %v537 = vpop.f32.mrf.mxu0
    %v538 = vadd.f32 0.0, %v537
    %v539 = vpop.f32.mrf.mxu0
    %540 = vmatprep.mubr.f32.mxu0 0.0
    %541 = vmatmul.mubr.f32.gmra.mxu0 %v205
    %v542 = vpop.f32.mrf.mxu0
    %v543 = vadd.f32 0.0, %v542
    %v544 = vpop.f32.mrf.mxu0
    %545 = vmatprep.mubr.f32.mxu0 0.0
    %546 = vmatmul.mubr.f32.gmra.mxu0 %v210
    %v547 = vpop.f32.mrf.mxu0
    %v548 = vadd.f32 0.0, %v547
    %v549 = vpop.f32.mrf.mxu0
    %550 = vmatprep.mubr.f32.mxu0 0.0
    %551 = vmatmul.mubr.f32.gmra.mxu0 %v215
    %v552 = vpop.f32.mrf.mxu0
    %v553 = vadd.f32 0.0, %v552
    %v554 = vpop.f32.mrf.mxu0
    %555 = vmatprep.mubr.f32.mxu0 0.0
    %556 = vmatmul.mubr.f32.gmra.mxu0 %v220
    %v557 = vpop.f32.mrf.mxu0
    %v558 = vadd.f32 0.0, %v557
    %v559 = vpop.f32.mrf.mxu0
    %560 = vmatprep.mubr.f32.mxu0 0.0
    %561 = vmatmul.mubr.f32.gmra.mxu0 %v225
    %v562 = vpop.f32.mrf.mxu0
    %v563 = vadd.f32 0.0, %v562
    %v564 = vpop.f32.mrf.mxu0
    %565 = vmatprep.mubr.f32.mxu0 0.0
    %566 = vmatmul.mubr.f32.gmra.mxu0 %v230
    %v567 = vpop.f32.mrf.mxu0
    %v568 = vadd.f32 0.0, %v567
    %v569 = vpop.f32.mrf.mxu0
    %570 = vmatprep.mubr.f32.mxu0 0.0
    %571 = vmatmul.mubr.f32.gmra.mxu0 %v235
    %v572 = vpop.f32.mrf.mxu0
    %v573 = vadd.f32 0.0, %v572
    %v574 = vpop.f32.mrf.mxu0
    %575 = vmatprep.mubr.f32.mxu0 0.0
    %576 = vmatmul.mubr.f32.gmra.mxu0 %v240
    %v577 = vpop.f32.mrf.mxu0
    %v578 = vadd.f32 0.0, %v577
    %v579 = vpop.f32.mrf.mxu0
    %580 = vmatprep.mubr.f32.mxu0 0.0
    %581 = vmatmul.mubr.f32.gmra.mxu0 %v245
    %v582 = vpop.f32.mrf.mxu0
    %v583 = vadd.f32 0.0, %v582
    %v584 = vpop.f32.mrf.mxu0
    %585 = vmatprep.mubr.f32.mxu0 0.0
    %586 = vmatmul.mubr.f32.gmra.mxu0 %v250
    %v587 = vpop.f32.mrf.mxu0
    %v588 = vadd.f32 0.0, %v587
    %v589 = vpop.f32.mrf.mxu0
    %590 = vmatprep.mubr.f32.mxu0 0.0
    %591 = vmatmul.mubr.f32.gmra.mxu0 %v255
    %v592 = vpop.f32.mrf.mxu0
    %v593 = vadd.f32 0.0, %v592
    %v594 = vpop.f32.mrf.mxu0
    %595 = vmatprep.mubr.f32.mxu0 0.0
    %596 = vmatmul.mubr.f32.gmra.mxu0 %v260
    %v597 = vpop.f32.mrf.mxu0
    %v598 = vadd.f32 0.0, %v597
    %v599 = vpop.f32.mrf.mxu0
    %600 = vdwg.mxu0
    %601 = vst [vmem:[#allocation11] sm:$0xff] %v523
    %602 = vst [vmem:[#allocation11 + $0x8] sm:$0xff] %v528
    %603 = vst [vmem:[#allocation11 + $0x10] sm:$0xff] %v533
    %604 = vst [vmem:[#allocation11 + $0x18] sm:$0xff] %v538
    %605 = vst [vmem:[#allocation11 + $0x20] sm:$0xff] %v543
    %606 = vst [vmem:[#allocation11 + $0x28] sm:$0xff] %v548
    %607 = vst [vmem:[#allocation11 + $0x30] sm:$0xff] %v553
    %608 = vst [vmem:[#allocation11 + $0x38] sm:$0xff] %v558
    %609 = vst [vmem:[#allocation11 + $0x40] sm:$0xff] %v563
    %610 = vst [vmem:[#allocation11 + $0x48] sm:$0xff] %v568
    %611 = vst [vmem:[#allocation11 + $0x50] sm:$0xff] %v573
    %612 = vst [vmem:[#allocation11 + $0x58] sm:$0xff] %v578
    %613 = vst [vmem:[#allocation11 + $0x60] sm:$0xff] %v583
    %614 = vst [vmem:[#allocation11 + $0x68] sm:$0xff] %v588
    %615 = vst [vmem:[#allocation11 + $0x70] sm:$0xff] %v593
    %616 = vst [vmem:[#allocation11 + $0x78] sm:$0xff] %v598
    // Predicated region
    $region38: #{tpu_custom_call.1} parent=1 // pred_check
      _
    $region39: #{tpu_custom_call.1} parent=1 // pred_check_branch
      %618 = sbr.rel (0) target = $region41
    $region40: #{tpu_custom_call.1} parent=1 // pred_region
      %s620 = ssub.s32 2048, 2048
      %621 = vsyncadd [#allocation4], %s620
      %s622 = sshll.u32 [#allocation10], 4
      %s623 = int_to_ptr.vmem [resolvable:$true] %s622
      %628 = dma.vmem_to_hbm [thread:$0]  %s623, 2048, %s5, [#allocation4], 128, 128, 8
    $region41: #{tpu_custom_call.1} parent=1 // pred_fallthru
      _
    // Predicated region
    $region42: #{tpu_custom_call.1} parent=1 // pred_check
      _
    $region43: #{tpu_custom_call.1} parent=1 // pred_check_branch
      %630 = sbr.rel (0) target = $region45
    $region44: #{tpu_custom_call.1} parent=1 // pred_region
      %s632 = ssub.s32 2048, 2048
      %633 = vsyncadd [#allocation12], %s632
      %s634 = sshll.u32 [#allocation11], 4
      %s635 = int_to_ptr.vmem [resolvable:$true] %s634
      %640 = dma.vmem_to_hbm [thread:$0]  %s635, 2048, %s6, [#allocation12], 128, 128, 8
    $region45: #{tpu_custom_call.1} parent=1 // pred_fallthru
      _
    // Predicated region
    $region46: #{tpu_custom_call.1} parent=1 // pred_check
      _
    $region47: #{tpu_custom_call.1} parent=1 // pred_check_branch
      %642 = sbr.rel (0) target = $region49
    $region48: #{tpu_custom_call.1} parent=1 // pred_region
      %643 = dma.done [#allocation4], 2048
    $region49: #{tpu_custom_call.1} parent=1 // pred_fallthru
      _
    // Predicated region
    $region50: #{tpu_custom_call.1} parent=1 // pred_check
      _
    $region51: #{tpu_custom_call.1} parent=1 // pred_check_branch
      %645 = sbr.rel (0) target = $region53
    $region52: #{tpu_custom_call.1} parent=1 // pred_region
      %646 = dma.done [#allocation12], 2048
    $region53: #{tpu_custom_call.1} parent=1 // pred_fallthru
      _
    %647 = vsyncpa [#allocation3], 1
    %648 = vsyncpa [#allocation6], 1
    %649 = vsyncpa [#allocation9], 1
    %650 = vsyncpa [#allocation4], 1
    %651 = vsyncpa [#allocation12], 1

</llo_original>
